<compile_context>
chip_gen: v6e
topology: v6e:2x2x1
jax: 0.10.0
libtpu: 0.0.40
codegen_flags: <defaults>
</compile_context>

<pallas_src>
import functools

import jax
import jax.numpy as jnp
from jax import lax
from jax.experimental import pallas as pl
from jax.experimental.pallas import tpu as pltpu


def _roll_static(x, shift, axis):
    """Circular roll by a static shift (torch.roll: toward higher indices)."""
    n = x.shape[axis]
    s = shift % n
    if s == 0:
        return x
    lo = lax.slice_in_dim(x, n - s, n, axis=axis)
    hi = lax.slice_in_dim(x, 0, n - s, axis=axis)
    return jnp.concatenate([lo, hi], axis=axis)


def _shift_zero(x, shift, axis):
    """out[..., i, ...] = x[..., i+shift, ...] if in bounds else 0 (static)."""
    if shift == 0:
        return x
    n = x.shape[axis]
    zshape = list(x.shape)
    zshape[axis] = abs(shift)
    zeros = jnp.zeros(zshape, x.dtype)
    if shift > 0:
        body = lax.slice_in_dim(x, shift, n, axis=axis)
        return jnp.concatenate([body, zeros], axis=axis)
    body = lax.slice_in_dim(x, 0, n + shift, axis=axis)
    return jnp.concatenate([zeros, body], axis=axis)


def _base_block_kernel(x_ref, w1_ref, b1_ref, wd_ref, bd_ref, w2_ref, b2_ref,
                       o_ref, *, d, shift_h, shift_w):
    """One block of `nb` images per grid step.

    x_ref, o_ref : (nb, H, W, C)   pre-roll input / output, C lane-padded
    w1_ref       : (C, C)          conv1 weights (Cin, Cout), bf16
    wd_ref       : (C, 9*C)        dilated 3x3 taps, tap-major columns, bf16
    w2_ref       : (C, C)          conv2 weights with BN scale folded, bf16
    b1/bd/b2_ref : (1, C)          biases (b2 has BN shift folded), f32
    """
    nb, H, W, C = x_ref.shape
    M = nb * H * W

    identity = x_ref[...]                              # (nb, H, W, C) f32

    # Circular rolls (torch.roll) along H then W; rolls on distinct axes
    # commute. Done in-kernel so the image is read from HBM exactly once.
    xr = _roll_static(identity, shift_h, axis=1)
    xr = _roll_static(xr, shift_w, axis=2)
    xb = xr.reshape(M, C).astype(jnp.bfloat16)

    # conv1: 1x1 conv == per-pixel channel matmul (bf16 MXU, f32 accumulate).
    y1 = jnp.dot(xb, w1_ref[...], preferred_element_type=jnp.float32)
    y1 = (y1 + b1_ref[...]).astype(jnp.bfloat16)       # bf16 immediately

    # Dilated 3x3 conv (padding == dilation == d): one wide matmul over all 9
    # taps (N = 9*C), then output-side shift-and-add in f32. Zero padding of
    # the conv input is equivalent to zero-filling the shifted tap outputs.
    z = jnp.dot(y1, wd_ref[...], preferred_element_type=jnp.float32)
    z = z.reshape(nb, H, W, 9 * C)
    acc = None
    for kh in range(3):
        for kw in range(3):
            t = kh * 3 + kw
            zt = z[..., t * C:(t + 1) * C]             # lane-aligned slice
            zt = _shift_zero(zt, (kh - 1) * d, axis=1)
            zt = _shift_zero(zt, (kw - 1) * d, axis=2)
            acc = zt if acc is None else acc + zt
    acc = acc.reshape(M, C) + bd_ref[...]

    # conv2: 1x1 conv with inference BatchNorm folded into weights/bias.
    y2 = jnp.dot(acc.astype(jnp.bfloat16), w2_ref[...],
                 preferred_element_type=jnp.float32) + b2_ref[...]

    # ReLU + residual, f32.
    y = jnp.maximum(y2, 0.0).reshape(nb, H, W, C) + identity
    o_ref[...] = y.astype(o_ref.dtype)


def _prepare_params(params, C, CP):
    """Pad weights to lane-dense CP and fold inference BN into conv2."""
    pad_c = CP - C

    def pad_vec(v):
        return jnp.pad(v.astype(jnp.float32), (0, pad_c)).reshape(1, CP)

    def pad_mat(m):                                    # (Cin, Cout)
        return jnp.pad(m, ((0, pad_c), (0, pad_c)))

    w1m = pad_mat(params["w1"][:, :, 0, 0].T).astype(jnp.bfloat16)

    # Dilated taps as (CP, 9*CP), tap-major along columns (tap = kh*3 + kw).
    wd_cols = [pad_mat(params["wd"][:, :, kh, kw].T)
               for kh in range(3) for kw in range(3)]
    wdm = jnp.concatenate(wd_cols, axis=1).astype(jnp.bfloat16)

    # Fold BatchNorm (running stats) into conv2: scale output columns, shift
    # bias. Folding is done on un-padded arrays so padded entries stay zero.
    inv_std = params["gamma"] / jnp.sqrt(params["running_var"] + 1e-5)
    w2_f = params["w2"][:, :, 0, 0].T * inv_std[None, :]
    b2_f = (params["b2"] * inv_std
            + params["beta"] - params["running_mean"] * inv_std)
    w2m = pad_mat(w2_f).astype(jnp.bfloat16)

    return dict(w1=w1m, b1=pad_vec(params["b1"]),
                wd=wdm, bd=pad_vec(params["bd"]),
                w2=w2m, b2=pad_vec(b2_f))


def base_block_nhwc_padded(x, prepared, *, scale, size, images_per_step=1):
    """Kernel entry point on padded NHWC activations (chainable across blocks)."""
    N, H, W, CP = x.shape
    d = scale
    nb = images_per_step
    if N % nb != 0:
        raise ValueError("images_per_step must divide the batch size")
    grid = (N // nb,)

    kernel = functools.partial(_base_block_kernel, d=d,
                               shift_h=size[0] // 4, shift_w=size[1] // 4)

    img_spec = pl.BlockSpec((nb, H, W, CP), lambda n: (n, 0, 0, 0))

    def full(shape):
        return pl.BlockSpec(shape, lambda n: (0,) * len(shape))

    flops = 2 * N * H * W * 11 * CP * CP                       # 3 matmuls
    bytes_accessed = (2 * N * H * W * CP * 4                   # image in/out
                      + 11 * CP * CP * 2                       # bf16 weights
                      + 3 * CP * 4)                            # biases

    return pl.pallas_call(
        kernel,
        out_shape=jax.ShapeDtypeStruct((N, H, W, CP), x.dtype),
        grid_spec=pltpu.PrefetchScalarGridSpec(
            num_scalar_prefetch=0,
            grid=grid,
            in_specs=[img_spec,
                      full((CP, CP)), full((1, CP)),
                      full((CP, 9 * CP)), full((1, CP)),
                      full((CP, CP)), full((1, CP))],
            out_specs=img_spec,
        ),
        compiler_params=pltpu.CompilerParams(
            dimension_semantics=("parallel",),
            vmem_limit_bytes=32 * 1024 * 1024),
        cost_estimate=pl.CostEstimate(
            flops=flops, transcendentals=0, bytes_accessed=bytes_accessed),
    )(x, prepared["w1"], prepared["b1"], prepared["wd"], prepared["bd"],
      prepared["w2"], prepared["b2"])


def base_block_forward(x_nchw, params, *, scale, size, images_per_step=1):
    """PyTorch-compatible NCHW wrapper around the padded-NHWC kernel."""
    N, C, H, W = x_nchw.shape
    CP = ((C + 127) // 128) * 128
    prepared = _prepare_params(params, C, CP)

    x = jnp.transpose(x_nchw, (0, 2, 3, 1))                    # NHWC
    if CP > C:
        x = jnp.pad(x, ((0, 0), (0, 0), (0, 0), (0, CP - C)))

    out = base_block_nhwc_padded(x, prepared, scale=scale, size=size,
                                 images_per_step=images_per_step)
    return jnp.transpose(out[..., :C], (0, 3, 1, 2))


def base_block_reference(x, params, *, scale, size):
    """Pure-JAX (XLA conv, f32) reference, NCHW, matching BaseBlock.forward."""
    h_cfg, w_cfg = size
    xr = jnp.roll(x, h_cfg // 4, axis=2)
    xr = jnp.roll(xr, w_cfg // 4, axis=3)

    def conv(v, w, b, dil, pad):
        y = lax.conv_general_dilated(
            v, w, window_strides=(1, 1), padding=pad,
            rhs_dilation=(dil, dil),
            dimension_numbers=("NCHW", "OIHW", "NCHW"))
        return y + b[None, :, None, None]

    y = conv(xr, params["w1"], params["b1"], 1, "VALID")
    y = conv(y, params["wd"], params["bd"], scale,
             [(scale, scale), (scale, scale)])
    y = conv(y, params["w2"], params["b2"], 1, "VALID")
    inv_std = params["gamma"] / jnp.sqrt(params["running_var"] + 1e-5)
    y = ((y - params["running_mean"][None, :, None, None])
         * inv_std[None, :, None, None]
         + params["beta"][None, :, None, None])
    y = jnp.maximum(y, 0.0)
    return y + x


if __name__ == "__main__":
    # Small shapes consistent with the module: proj_dim=64 channels, size=(H, W).
    N, C, H, W = 2, 64, 8, 16
    scale = 2
    size = (H, W)

    key = jax.random.PRNGKey(0)
    ks = jax.random.split(key, 11)
    params = dict(
        w1=0.05 * jax.random.normal(ks[0], (C, C, 1, 1), jnp.float32),
        b1=0.05 * jax.random.normal(ks[1], (C,), jnp.float32),
        wd=0.05 * jax.random.normal(ks[2], (C, C, 3, 3), jnp.float32),
        bd=0.05 * jax.random.normal(ks[3], (C,), jnp.float32),
        w2=0.05 * jax.random.normal(ks[4], (C, C, 1, 1), jnp.float32),
        b2=0.05 * jax.random.normal(ks[5], (C,), jnp.float32),
        gamma=1.0 + 0.1 * jax.random.normal(ks[6], (C,), jnp.float32),
        beta=0.1 * jax.random.normal(ks[7], (C,), jnp.float32),
        running_mean=0.1 * jax.random.normal(ks[8], (C,), jnp.float32),
        running_var=jax.random.uniform(ks[9], (C,), jnp.float32, 0.5, 1.5),
    )
    x = jax.random.normal(ks[10], (N, C, H, W), jnp.float32)

    out = base_block_forward(x, params, scale=scale, size=size)
    out = jax.block_until_ready(out)

    ref = base_block_reference(x, params, scale=scale, size=size)
    err = float(jnp.max(jnp.abs(out - ref)))
    # 1e-1 tolerance accounts for bf16 MXU operands (and BN folded into bf16
    # conv2 weights) vs. the f32 XLA reference; structural errors (wrong
    # roll/tap/BN folding) produce errors well above this.
    if out.shape != x.shape or not (err < 1e-1):
        raise SystemExit(f"mismatch: max abs err = {err}")
    print("KERNEL_OK")
</pallas_src>

<mosaic_0001>
module attributes {stable_mosaic.version = 11 : i64} {
  func.func @_base_block_kernel(%arg0: i32, %arg1: memref<1x8x16x128xf32, #tpu.memory_space<vmem>>, %arg2: memref<128x128xbf16, #tpu.memory_space<vmem>>, %arg3: memref<1x128xf32, #tpu.memory_space<vmem>>, %arg4: memref<128x1152xbf16, #tpu.memory_space<vmem>>, %arg5: memref<1x128xf32, #tpu.memory_space<vmem>>, %arg6: memref<128x128xbf16, #tpu.memory_space<vmem>>, %arg7: memref<1x128xf32, #tpu.memory_space<vmem>>, %arg8: memref<1x8x16x128xf32, #tpu.memory_space<vmem>>) attributes {dimension_semantics = [#tpu.dimension_semantics<parallel>], iteration_bounds = array<i64: 2>, scalar_prefetch = 0 : i64, scratch_operands = 0 : i64, tpu.core_type = #tpu.core_type<tc>, window_params = [{transform_indices = @transform_0, window_bounds = array<i64: 1, 8, 16, 128>}, {pipeline_mode = #tpu.pipeline_mode<synchronous>, transform_indices = @transform_1, window_bounds = array<i64: 128, 128>}, {pipeline_mode = #tpu.pipeline_mode<synchronous>, transform_indices = @transform_2, window_bounds = array<i64: 1, 128>}, {pipeline_mode = #tpu.pipeline_mode<synchronous>, transform_indices = @transform_3, window_bounds = array<i64: 128, 1152>}, {pipeline_mode = #tpu.pipeline_mode<synchronous>, transform_indices = @transform_4, window_bounds = array<i64: 1, 128>}, {pipeline_mode = #tpu.pipeline_mode<synchronous>, transform_indices = @transform_5, window_bounds = array<i64: 128, 128>}, {pipeline_mode = #tpu.pipeline_mode<synchronous>, transform_indices = @transform_6, window_bounds = array<i64: 1, 128>}, {transform_indices = @transform_7, window_bounds = array<i64: 1, 8, 16, 128>}]} {
    %c0 = arith.constant 0 : index
    %c0_0 = arith.constant 0 : index
    %c0_1 = arith.constant 0 : index
    %c0_2 = arith.constant 0 : index
    %0 = vector.load %arg1[%c0, %c0_0, %c0_1, %c0_2] : memref<1x8x16x128xf32, #tpu.memory_space<vmem>>, vector<1x8x16x128xf32>
    %1 = vector.extract_strided_slice %0 {offsets = [0, 6, 0, 0], sizes = [1, 2, 16, 128], strides = [1, 1, 1, 1]} : vector<1x8x16x128xf32> to vector<1x2x16x128xf32>
    %2 = vector.extract_strided_slice %0 {offsets = [0, 0, 0, 0], sizes = [1, 6, 16, 128], strides = [1, 1, 1, 1]} : vector<1x8x16x128xf32> to vector<1x6x16x128xf32>
    %3 = tpu.concatenate %1, %2 in 1 : vector<1x2x16x128xf32>, vector<1x6x16x128xf32> -> vector<1x8x16x128xf32>
    %4 = vector.extract_strided_slice %3 {offsets = [0, 0, 12, 0], sizes = [1, 8, 4, 128], strides = [1, 1, 1, 1]} : vector<1x8x16x128xf32> to vector<1x8x4x128xf32>
    %5 = vector.extract_strided_slice %3 {offsets = [0, 0, 0, 0], sizes = [1, 8, 12, 128], strides = [1, 1, 1, 1]} : vector<1x8x16x128xf32> to vector<1x8x12x128xf32>
    %6 = tpu.concatenate %4, %5 in 2 : vector<1x8x4x128xf32>, vector<1x8x12x128xf32> -> vector<1x8x16x128xf32>
    %7 = vector.shape_cast %6 : vector<1x8x16x128xf32> to vector<128x128xf32>
    %8 = arith.truncf %7 : vector<128x128xf32> to vector<128x128xbf16>
    %c0_3 = arith.constant 0 : index
    %c0_4 = arith.constant 0 : index
    %9 = vector.load %arg2[%c0_3, %c0_4] : memref<128x128xbf16, #tpu.memory_space<vmem>>, vector<128x128xbf16>
    %cst = arith.constant dense<0.000000e+00> : vector<128x128xf32>
    %10 = tpu.matmul %8, %9, %cst {dimension_numbers = #tpu.dot_dimension_numbers<[1], [0], [0], [1], [0, 0, 1, 1], [], []>} : vector<128x128xbf16>, vector<128x128xbf16>, vector<128x128xf32> -> vector<128x128xf32>
    %c0_5 = arith.constant 0 : index
    %c0_6 = arith.constant 0 : index
    %11 = vector.load %arg3[%c0_5, %c0_6] : memref<1x128xf32, #tpu.memory_space<vmem>>, vector<1x128xf32>
    %12 = vector.broadcast %11 : vector<1x128xf32> to vector<128x128xf32>
    %13 = arith.addf %10, %12 : vector<128x128xf32>
    %14 = arith.truncf %13 : vector<128x128xf32> to vector<128x128xbf16>
    %c0_7 = arith.constant 0 : index
    %c0_8 = arith.constant 0 : index
    %15 = vector.load %arg4[%c0_7, %c0_8] : memref<128x1152xbf16, #tpu.memory_space<vmem>>, vector<128x1152xbf16>
    %cst_9 = arith.constant dense<0.000000e+00> : vector<128x1152xf32>
    %16 = tpu.matmul %14, %15, %cst_9 {dimension_numbers = #tpu.dot_dimension_numbers<[1], [0], [0], [1], [0, 0, 1, 1], [], []>} : vector<128x128xbf16>, vector<128x1152xbf16>, vector<128x1152xf32> -> vector<128x1152xf32>
    %17 = vector.shape_cast %16 : vector<128x1152xf32> to vector<1x8x16x1152xf32>
    %18 = vector.extract_strided_slice %17 {offsets = [0, 0, 0, 0], sizes = [1, 8, 16, 128], strides = [1, 1, 1, 1]} : vector<1x8x16x1152xf32> to vector<1x8x16x128xf32>
    %cst_10 = arith.constant 0.000000e+00 : f32
    %19 = vector.broadcast %cst_10 : f32 to vector<1x2x16x128xf32>
    %20 = vector.extract_strided_slice %18 {offsets = [0, 0, 0, 0], sizes = [1, 6, 16, 128], strides = [1, 1, 1, 1]} : vector<1x8x16x128xf32> to vector<1x6x16x128xf32>
    %21 = tpu.concatenate %19, %20 in 1 : vector<1x2x16x128xf32>, vector<1x6x16x128xf32> -> vector<1x8x16x128xf32>
    %cst_11 = arith.constant 0.000000e+00 : f32
    %22 = vector.broadcast %cst_11 : f32 to vector<1x8x2x128xf32>
    %23 = vector.extract_strided_slice %21 {offsets = [0, 0, 0, 0], sizes = [1, 8, 14, 128], strides = [1, 1, 1, 1]} : vector<1x8x16x128xf32> to vector<1x8x14x128xf32>
    %24 = tpu.concatenate %22, %23 in 2 : vector<1x8x2x128xf32>, vector<1x8x14x128xf32> -> vector<1x8x16x128xf32>
    %25 = vector.extract_strided_slice %17 {offsets = [0, 0, 0, 128], sizes = [1, 8, 16, 128], strides = [1, 1, 1, 1]} : vector<1x8x16x1152xf32> to vector<1x8x16x128xf32>
    %cst_12 = arith.constant 0.000000e+00 : f32
    %26 = vector.broadcast %cst_12 : f32 to vector<1x2x16x128xf32>
    %27 = vector.extract_strided_slice %25 {offsets = [0, 0, 0, 0], sizes = [1, 6, 16, 128], strides = [1, 1, 1, 1]} : vector<1x8x16x128xf32> to vector<1x6x16x128xf32>
    %28 = tpu.concatenate %26, %27 in 1 : vector<1x2x16x128xf32>, vector<1x6x16x128xf32> -> vector<1x8x16x128xf32>
    %29 = arith.addf %24, %28 : vector<1x8x16x128xf32>
    %30 = vector.extract_strided_slice %17 {offsets = [0, 0, 0, 256], sizes = [1, 8, 16, 128], strides = [1, 1, 1, 1]} : vector<1x8x16x1152xf32> to vector<1x8x16x128xf32>
    %cst_13 = arith.constant 0.000000e+00 : f32
    %31 = vector.broadcast %cst_13 : f32 to vector<1x2x16x128xf32>
    %32 = vector.extract_strided_slice %30 {offsets = [0, 0, 0, 0], sizes = [1, 6, 16, 128], strides = [1, 1, 1, 1]} : vector<1x8x16x128xf32> to vector<1x6x16x128xf32>
    %33 = tpu.concatenate %31, %32 in 1 : vector<1x2x16x128xf32>, vector<1x6x16x128xf32> -> vector<1x8x16x128xf32>
    %cst_14 = arith.constant 0.000000e+00 : f32
    %34 = vector.broadcast %cst_14 : f32 to vector<1x8x2x128xf32>
    %35 = vector.extract_strided_slice %33 {offsets = [0, 0, 2, 0], sizes = [1, 8, 14, 128], strides = [1, 1, 1, 1]} : vector<1x8x16x128xf32> to vector<1x8x14x128xf32>
    %36 = tpu.concatenate %35, %34 in 2 : vector<1x8x14x128xf32>, vector<1x8x2x128xf32> -> vector<1x8x16x128xf32>
    %37 = arith.addf %29, %36 : vector<1x8x16x128xf32>
    %38 = vector.extract_strided_slice %17 {offsets = [0, 0, 0, 384], sizes = [1, 8, 16, 128], strides = [1, 1, 1, 1]} : vector<1x8x16x1152xf32> to vector<1x8x16x128xf32>
    %cst_15 = arith.constant 0.000000e+00 : f32
    %39 = vector.broadcast %cst_15 : f32 to vector<1x8x2x128xf32>
    %40 = vector.extract_strided_slice %38 {offsets = [0, 0, 0, 0], sizes = [1, 8, 14, 128], strides = [1, 1, 1, 1]} : vector<1x8x16x128xf32> to vector<1x8x14x128xf32>
    %41 = tpu.concatenate %39, %40 in 2 : vector<1x8x2x128xf32>, vector<1x8x14x128xf32> -> vector<1x8x16x128xf32>
    %42 = arith.addf %37, %41 : vector<1x8x16x128xf32>
    %43 = vector.extract_strided_slice %17 {offsets = [0, 0, 0, 512], sizes = [1, 8, 16, 128], strides = [1, 1, 1, 1]} : vector<1x8x16x1152xf32> to vector<1x8x16x128xf32>
    %44 = arith.addf %42, %43 : vector<1x8x16x128xf32>
    %45 = vector.extract_strided_slice %17 {offsets = [0, 0, 0, 640], sizes = [1, 8, 16, 128], strides = [1, 1, 1, 1]} : vector<1x8x16x1152xf32> to vector<1x8x16x128xf32>
    %cst_16 = arith.constant 0.000000e+00 : f32
    %46 = vector.broadcast %cst_16 : f32 to vector<1x8x2x128xf32>
    %47 = vector.extract_strided_slice %45 {offsets = [0, 0, 2, 0], sizes = [1, 8, 14, 128], strides = [1, 1, 1, 1]} : vector<1x8x16x128xf32> to vector<1x8x14x128xf32>
    %48 = tpu.concatenate %47, %46 in 2 : vector<1x8x14x128xf32>, vector<1x8x2x128xf32> -> vector<1x8x16x128xf32>
    %49 = arith.addf %44, %48 : vector<1x8x16x128xf32>
    %50 = vector.extract_strided_slice %17 {offsets = [0, 0, 0, 768], sizes = [1, 8, 16, 128], strides = [1, 1, 1, 1]} : vector<1x8x16x1152xf32> to vector<1x8x16x128xf32>
    %cst_17 = arith.constant 0.000000e+00 : f32
    %51 = vector.broadcast %cst_17 : f32 to vector<1x2x16x128xf32>
    %52 = vector.extract_strided_slice %50 {offsets = [0, 2, 0, 0], sizes = [1, 6, 16, 128], strides = [1, 1, 1, 1]} : vector<1x8x16x128xf32> to vector<1x6x16x128xf32>
    %53 = tpu.concatenate %52, %51 in 1 : vector<1x6x16x128xf32>, vector<1x2x16x128xf32> -> vector<1x8x16x128xf32>
    %cst_18 = arith.constant 0.000000e+00 : f32
    %54 = vector.broadcast %cst_18 : f32 to vector<1x8x2x128xf32>
    %55 = vector.extract_strided_slice %53 {offsets = [0, 0, 0, 0], sizes = [1, 8, 14, 128], strides = [1, 1, 1, 1]} : vector<1x8x16x128xf32> to vector<1x8x14x128xf32>
    %56 = tpu.concatenate %54, %55 in 2 : vector<1x8x2x128xf32>, vector<1x8x14x128xf32> -> vector<1x8x16x128xf32>
    %57 = arith.addf %49, %56 : vector<1x8x16x128xf32>
    %58 = vector.extract_strided_slice %17 {offsets = [0, 0, 0, 896], sizes = [1, 8, 16, 128], strides = [1, 1, 1, 1]} : vector<1x8x16x1152xf32> to vector<1x8x16x128xf32>
    %cst_19 = arith.constant 0.000000e+00 : f32
    %59 = vector.broadcast %cst_19 : f32 to vector<1x2x16x128xf32>
    %60 = vector.extract_strided_slice %58 {offsets = [0, 2, 0, 0], sizes = [1, 6, 16, 128], strides = [1, 1, 1, 1]} : vector<1x8x16x128xf32> to vector<1x6x16x128xf32>
    %61 = tpu.concatenate %60, %59 in 1 : vector<1x6x16x128xf32>, vector<1x2x16x128xf32> -> vector<1x8x16x128xf32>
    %62 = arith.addf %57, %61 : vector<1x8x16x128xf32>
    %63 = vector.extract_strided_slice %17 {offsets = [0, 0, 0, 1024], sizes = [1, 8, 16, 128], strides = [1, 1, 1, 1]} : vector<1x8x16x1152xf32> to vector<1x8x16x128xf32>
    %cst_20 = arith.constant 0.000000e+00 : f32
    %64 = vector.broadcast %cst_20 : f32 to vector<1x2x16x128xf32>
    %65 = vector.extract_strided_slice %63 {offsets = [0, 2, 0, 0], sizes = [1, 6, 16, 128], strides = [1, 1, 1, 1]} : vector<1x8x16x128xf32> to vector<1x6x16x128xf32>
    %66 = tpu.concatenate %65, %64 in 1 : vector<1x6x16x128xf32>, vector<1x2x16x128xf32> -> vector<1x8x16x128xf32>
    %cst_21 = arith.constant 0.000000e+00 : f32
    %67 = vector.broadcast %cst_21 : f32 to vector<1x8x2x128xf32>
    %68 = vector.extract_strided_slice %66 {offsets = [0, 0, 2, 0], sizes = [1, 8, 14, 128], strides = [1, 1, 1, 1]} : vector<1x8x16x128xf32> to vector<1x8x14x128xf32>
    %69 = tpu.concatenate %68, %67 in 2 : vector<1x8x14x128xf32>, vector<1x8x2x128xf32> -> vector<1x8x16x128xf32>
    %70 = arith.addf %62, %69 : vector<1x8x16x128xf32>
    %71 = vector.shape_cast %70 : vector<1x8x16x128xf32> to vector<128x128xf32>
    %c0_22 = arith.constant 0 : index
    %c0_23 = arith.constant 0 : index
    %72 = vector.load %arg5[%c0_22, %c0_23] : memref<1x128xf32, #tpu.memory_space<vmem>>, vector<1x128xf32>
    %73 = vector.broadcast %72 : vector<1x128xf32> to vector<128x128xf32>
    %74 = arith.addf %71, %73 : vector<128x128xf32>
    %75 = arith.truncf %74 : vector<128x128xf32> to vector<128x128xbf16>
    %c0_24 = arith.constant 0 : index
    %c0_25 = arith.constant 0 : index
    %76 = vector.load %arg6[%c0_24, %c0_25] : memref<128x128xbf16, #tpu.memory_space<vmem>>, vector<128x128xbf16>
    %cst_26 = arith.constant dense<0.000000e+00> : vector<128x128xf32>
    %77 = tpu.matmul %75, %76, %cst_26 {dimension_numbers = #tpu.dot_dimension_numbers<[1], [0], [0], [1], [0, 0, 1, 1], [], []>} : vector<128x128xbf16>, vector<128x128xbf16>, vector<128x128xf32> -> vector<128x128xf32>
    %c0_27 = arith.constant 0 : index
    %c0_28 = arith.constant 0 : index
    %78 = vector.load %arg7[%c0_27, %c0_28] : memref<1x128xf32, #tpu.memory_space<vmem>>, vector<1x128xf32>
    %79 = vector.broadcast %78 : vector<1x128xf32> to vector<128x128xf32>
    %80 = arith.addf %77, %79 : vector<128x128xf32>
    %cst_29 = arith.constant 0.000000e+00 : f32
    %81 = vector.broadcast %cst_29 : f32 to vector<128x128xf32>
    %82 = arith.maximumf %80, %81 : vector<128x128xf32>
    %83 = vector.shape_cast %82 : vector<128x128xf32> to vector<1x8x16x128xf32>
    %84 = arith.addf %83, %0 : vector<1x8x16x128xf32>
    %c0_30 = arith.constant 0 : index
    %c0_31 = arith.constant 0 : index
    %c0_32 = arith.constant 0 : index
    %c0_33 = arith.constant 0 : index
    %85 = vector.load %arg8[%c0_30, %c0_31, %c0_32, %c0_33] : memref<1x8x16x128xf32, #tpu.memory_space<vmem>>, vector<1x8x16x128xf32>
    tpu.vector_store %arg8[%c0_30, %c0_31, %c0_32, %c0_33], %84 {strides = array<i32>} : memref<1x8x16x128xf32, #tpu.memory_space<vmem>>, vector<1x8x16x128xf32>,
    return
  }
  func.func @transform_0(%arg0: i32) -> (i32, i32, i32, i32) {
    %c0_i32 = arith.constant 0 : i32
    %c0_i32_0 = arith.constant 0 : i32
    %c0_i32_1 = arith.constant 0 : i32
    %c0_i32_2 = arith.constant 0 : i32
    return %arg0, %c0_i32, %c0_i32_0, %c0_i32_1 : i32, i32, i32, i32
  }
  func.func @transform_1(%arg0: i32) -> (i32, i32) {
    %c0_i32 = arith.constant 0 : i32
    %c0_i32_0 = arith.constant 0 : i32
    %c0_i32_1 = arith.constant 0 : i32
    return %c0_i32, %c0_i32_0 : i32, i32
  }
  func.func @transform_2(%arg0: i32) -> (i32, i32) {
    %c0_i32 = arith.constant 0 : i32
    %c0_i32_0 = arith.constant 0 : i32
    %c0_i32_1 = arith.constant 0 : i32
    return %c0_i32, %c0_i32_0 : i32, i32
  }
  func.func @transform_3(%arg0: i32) -> (i32, i32) {
    %c0_i32 = arith.constant 0 : i32
    %c0_i32_0 = arith.constant 0 : i32
    %c0_i32_1 = arith.constant 0 : i32
    return %c0_i32, %c0_i32_0 : i32, i32
  }
  func.func @transform_4(%arg0: i32) -> (i32, i32) {
    %c0_i32 = arith.constant 0 : i32
    %c0_i32_0 = arith.constant 0 : i32
    %c0_i32_1 = arith.constant 0 : i32
    return %c0_i32, %c0_i32_0 : i32, i32
  }
  func.func @transform_5(%arg0: i32) -> (i32, i32) {
    %c0_i32 = arith.constant 0 : i32
    %c0_i32_0 = arith.constant 0 : i32
    %c0_i32_1 = arith.constant 0 : i32
    return %c0_i32, %c0_i32_0 : i32, i32
  }
  func.func @transform_6(%arg0: i32) -> (i32, i32) {
    %c0_i32 = arith.constant 0 : i32
    %c0_i32_0 = arith.constant 0 : i32
    %c0_i32_1 = arith.constant 0 : i32
    return %c0_i32, %c0_i32_0 : i32, i32
  }
  func.func @transform_7(%arg0: i32) -> (i32, i32, i32, i32) {
    %c0_i32 = arith.constant 0 : i32
    %c0_i32_0 = arith.constant 0 : i32
    %c0_i32_1 = arith.constant 0 : i32
    %c0_i32_2 = arith.constant 0 : i32
    return %arg0, %c0_i32, %c0_i32_0, %c0_i32_1 : i32, i32, i32, i32
  }
}

</mosaic_0001>

<llo_original>
// kernel: tpu_custom_call.1
$region0: #{tpu_custom_call.1}
  #allocation0 [shape = 'u32[]', space=smem, size = 0x4, offset = 0x4, fixed_abs, tag = 'smem constant byte address 0x4 - core index']
  #allocation1 [shape = 'u32[144,128]{1,0:T(1,128)}', space=vmem, size = 0x12000, scoped, tag = 'internal scratch']
  %s0 = inlined_call_operand.hbm [shape: f32[2,8,16,128], index: 0, kind: input, shape index: {}]
  %s1 = inlined_call_operand.hbm [shape: bf16[128,128], index: 1, kind: input, shape index: {}]
  %s2 = inlined_call_operand.vmem [shape: f32[1,128], index: 2, kind: input, shape index: {}]
  %s3 = inlined_call_operand.hbm [shape: bf16[128,1152], index: 3, kind: input, shape index: {}]
  %s4 = inlined_call_operand.vmem [shape: f32[1,128], index: 4, kind: input, shape index: {}]
  %s5 = inlined_call_operand.hbm [shape: bf16[128,128], index: 5, kind: input, shape index: {}]
  %s6 = inlined_call_operand.vmem [shape: f32[1,128], index: 6, kind: input, shape index: {}]
  %s7 = inlined_call_operand.hbm [shape: f32[2,8,16,128], index: 7, kind: output, shape index: {}]
  %s8 = sld [smem:[#allocation0]]
  $region77: #{tpu_custom_call.1} parent=0
    _
  %s10 = ssub.s32 1, %s8
  %s11 = scalar_select 0, %s10, %s8
  $region1: #{tpu_custom_call.1} parent=0
    #allocation2 [shape = 'u8[131072]{0}', space=vmem, size = 0x20000, scoped, tag = 'input window, operand 0']
    #allocation3 [shape = 's32[2]{0}', space=sflag, size = 0x8, scoped, tag = 'scoped memory for tpu_custom_call.1']
    #allocation4 [shape = 's32[2]{0}', space=sflag, size = 0x8, scoped, tag = 'scoped memory for tpu_custom_call.1']
    #allocation5 [shape = 'u8[32768]{0}', space=vmem, size = 0x8000, scoped, tag = 'input window, operand 1, single buffered']
    #allocation6 [shape = 's32[1]{0}', space=sflag, size = 0x4, scoped, tag = 'scoped memory for tpu_custom_call.1']
    #allocation7 [shape = 'u8[294912]{0}', space=vmem, size = 0x48000, scoped, tag = 'input window, operand 3, single buffered']
    #allocation8 [shape = 'u8[32768]{0}', space=vmem, size = 0x8000, scoped, tag = 'input window, operand 5, single buffered']
    #allocation9 [shape = 's32[1]{0}', space=sflag, size = 0x4, scoped, tag = 'scoped memory for tpu_custom_call.1']
    #allocation10 [shape = 'u8[131072]{0}', space=vmem, size = 0x20000, scoped, tag = 'output window, operand 0']
    %12 = vsyncpa [#allocation3], 0
    %s13 = scalar_lea.sflag [#allocation3], 1
    %14 = vsyncpa %s13, 0
    %15 = vsyncpa [#allocation6], 0
    %16 = vsyncpa [#allocation9], 0
    %17 = vsyncpa [#allocation4], 0
    %s18 = scalar_lea.sflag [#allocation4], 1
    %19 = vsyncpa %s18, 0
    loop: start=0, step=1, limit=4
    $region2: #{tpu_custom_call.1} parent=1 // loop_pre_header
      _
    $region3: #{tpu_custom_call.1} parent=1 // loop_header
      %s21 = sphi 0, %s25
      %p22 = scmp.ge.s32.totalorder %s21, 4
      %s31 = sphi 0, %s33
      %s34 = sphi 0, %s31
      %s35 = sphi 0, %s34
      %s51 = sphi 0, %s35
      %s55 = sphi 0, %s55
      %s57 = sphi 0, %s55
      %s58 = sphi 0, %s57
      %s72 = sphi 0, %s58
      %s76 = sphi 0, %s76
      %s78 = sphi 0, %s76
      %s79 = sphi 0, %s78
      %s93 = sphi 0, %s79
      %s97 = sphi 0, %s97
      %s99 = sphi 0, %s97
      %s100 = sphi 0, %s99
      %s114 = sphi 0, %s100
      %s118 = sphi 0, %s118
      %s120 = sphi 0, %s118
      %s121 = sphi 0, %s120
      %s135 = sphi 0, %s121
      %s139 = sphi 0, %s139
      %s141 = sphi 0, %s139
      %s142 = sphi 0, %s141
      %s156 = sphi 0, %s142
      %s160 = sphi 0, %s160
      %s162 = sphi 0, %s160
      %s163 = sphi 0, %s162
      %s177 = sphi 0, %s163
      %s183 = sphi 0, %s185
      %s186 = sphi 0, %s183
      %s187 = sphi 0, %s186
      %s203 = sphi 0, %s187
    $region4: #{tpu_custom_call.1} parent=1 // loop_header_branch
      %24 = sbr.rel (%p22) target = $region8
    $region5: #{tpu_custom_call.1} parent=1 // loop_body
      %s26 = ssub.s32 %s21, 1
      %s27 = ssub.s32 %s21, 2
      %s28 = sadd.s32 %s21, 1
      %s29 = ssub.s32 %s21, %s28
      %p30 = scmp.eq.s32.totalorder %s29, 0
      %s32 = sadd.s32 %s31, 1
      %s33 = scalar_select %p30, %s31, %s32
      %p36 = pneg %p30
      %p37 = scmp.eq.s32.totalorder %s21, 1
      %p38 = por %p36, %p37
      %p39 = scmp.ne.s32.totalorder %s31, %s34
      %p40 = scmp.eq.s32.totalorder %s21, 0
      %p41 = por %p39, %p40
      %p42 = scmp.ne.s32.totalorder %s31, %s34
      %p43 = scmp.eq.s32.totalorder %s26, 1
      %p44 = por %p42, %p43
      %p45 = scmp.ne.s32.totalorder %s34, %s35
      %p46 = scmp.eq.s32.totalorder %s26, 0
      %p47 = por %p45, %p46
      %p48 = scmp.ne.s32.totalorder %s34, %s35
      %p49 = scmp.eq.s32.totalorder %s27, 1
      %p50 = por %p48, %p49
      %p52 = scmp.ne.s32.totalorder %s35, %s51
      %p53 = scmp.eq.s32.totalorder %s27, 0
      %p54 = por %p52, %p53
      %s56 = sadd.s32 %s55, 1
      %p59 = scmp.eq.s32.totalorder %s21, 1
      %p60 = scmp.ne.s32.totalorder %s55, %s57
      %p61 = scmp.eq.s32.totalorder %s21, 0
      %p62 = por %p60, %p61
      %p63 = scmp.ne.s32.totalorder %s55, %s57
      %p64 = scmp.eq.s32.totalorder %s26, 1
      %p65 = por %p63, %p64
      %p66 = scmp.ne.s32.totalorder %s57, %s58
      %p67 = scmp.eq.s32.totalorder %s26, 0
      %p68 = por %p66, %p67
      %p69 = scmp.ne.s32.totalorder %s57, %s58
      %p70 = scmp.eq.s32.totalorder %s27, 1
      %p71 = por %p69, %p70
      %p73 = scmp.ne.s32.totalorder %s58, %s72
      %p74 = scmp.eq.s32.totalorder %s27, 0
      %p75 = por %p73, %p74
      %s77 = sadd.s32 %s76, 1
      %p80 = scmp.eq.s32.totalorder %s21, 1
      %p81 = scmp.ne.s32.totalorder %s76, %s78
      %p82 = scmp.eq.s32.totalorder %s21, 0
      %p83 = por %p81, %p82
      %p84 = scmp.ne.s32.totalorder %s76, %s78
      %p85 = scmp.eq.s32.totalorder %s26, 1
      %p86 = por %p84, %p85
      %p87 = scmp.ne.s32.totalorder %s78, %s79
      %p88 = scmp.eq.s32.totalorder %s26, 0
      %p89 = por %p87, %p88
      %p90 = scmp.ne.s32.totalorder %s78, %s79
      %p91 = scmp.eq.s32.totalorder %s27, 1
      %p92 = por %p90, %p91
      %p94 = scmp.ne.s32.totalorder %s79, %s93
      %p95 = scmp.eq.s32.totalorder %s27, 0
      %p96 = por %p94, %p95
      %s98 = sadd.s32 %s97, 1
      %p101 = scmp.eq.s32.totalorder %s21, 1
      %p102 = scmp.ne.s32.totalorder %s97, %s99
      %p103 = scmp.eq.s32.totalorder %s21, 0
      %p104 = por %p102, %p103
      %p105 = scmp.ne.s32.totalorder %s97, %s99
      %p106 = scmp.eq.s32.totalorder %s26, 1
      %p107 = por %p105, %p106
      %p108 = scmp.ne.s32.totalorder %s99, %s100
      %p109 = scmp.eq.s32.totalorder %s26, 0
      %p110 = por %p108, %p109
      %p111 = scmp.ne.s32.totalorder %s99, %s100
      %p112 = scmp.eq.s32.totalorder %s27, 1
      %p113 = por %p111, %p112
      %p115 = scmp.ne.s32.totalorder %s100, %s114
      %p116 = scmp.eq.s32.totalorder %s27, 0
      %p117 = por %p115, %p116
      %s119 = sadd.s32 %s118, 1
      %p122 = scmp.eq.s32.totalorder %s21, 1
      %p123 = scmp.ne.s32.totalorder %s118, %s120
      %p124 = scmp.eq.s32.totalorder %s21, 0
      %p125 = por %p123, %p124
      %p126 = scmp.ne.s32.totalorder %s118, %s120
      %p127 = scmp.eq.s32.totalorder %s26, 1
      %p128 = por %p126, %p127
      %p129 = scmp.ne.s32.totalorder %s120, %s121
      %p130 = scmp.eq.s32.totalorder %s26, 0
      %p131 = por %p129, %p130
      %p132 = scmp.ne.s32.totalorder %s120, %s121
      %p133 = scmp.eq.s32.totalorder %s27, 1
      %p134 = por %p132, %p133
      %p136 = scmp.ne.s32.totalorder %s121, %s135
      %p137 = scmp.eq.s32.totalorder %s27, 0
      %p138 = por %p136, %p137
      %s140 = sadd.s32 %s139, 1
      %p143 = scmp.eq.s32.totalorder %s21, 1
      %p144 = scmp.ne.s32.totalorder %s139, %s141
      %p145 = scmp.eq.s32.totalorder %s21, 0
      %p146 = por %p144, %p145
      %p147 = scmp.ne.s32.totalorder %s139, %s141
      %p148 = scmp.eq.s32.totalorder %s26, 1
      %p149 = por %p147, %p148
      %p150 = scmp.ne.s32.totalorder %s141, %s142
      %p151 = scmp.eq.s32.totalorder %s26, 0
      %p152 = por %p150, %p151
      %p153 = scmp.ne.s32.totalorder %s141, %s142
      %p154 = scmp.eq.s32.totalorder %s27, 1
      %p155 = por %p153, %p154
      %p157 = scmp.ne.s32.totalorder %s142, %s156
      %p158 = scmp.eq.s32.totalorder %s27, 0
      %p159 = por %p157, %p158
      %s161 = sadd.s32 %s160, 1
      %p164 = scmp.eq.s32.totalorder %s21, 1
      %p165 = scmp.ne.s32.totalorder %s160, %s162
      %p166 = scmp.eq.s32.totalorder %s21, 0
      %p167 = por %p165, %p166
      %p168 = scmp.ne.s32.totalorder %s160, %s162
      %p169 = scmp.eq.s32.totalorder %s26, 1
      %p170 = por %p168, %p169
      %p171 = scmp.ne.s32.totalorder %s162, %s163
      %p172 = scmp.eq.s32.totalorder %s26, 0
      %p173 = por %p171, %p172
      %p174 = scmp.ne.s32.totalorder %s162, %s163
      %p175 = scmp.eq.s32.totalorder %s27, 1
      %p176 = por %p174, %p175
      %p178 = scmp.ne.s32.totalorder %s163, %s177
      %p179 = scmp.eq.s32.totalorder %s27, 0
      %p180 = por %p178, %p179
      %s181 = ssub.s32 %s21, %s28
      %p182 = scmp.eq.s32.totalorder %s181, 0
      %s184 = sadd.s32 %s183, 1
      %s185 = scalar_select %p182, %s183, %s184
      %p188 = pneg %p182
      %p189 = scmp.eq.s32.totalorder %s21, 1
      %p190 = por %p188, %p189
      %p191 = scmp.ne.s32.totalorder %s183, %s186
      %p192 = scmp.eq.s32.totalorder %s21, 0
      %p193 = por %p191, %p192
      %p194 = scmp.ne.s32.totalorder %s183, %s186
      %p195 = scmp.eq.s32.totalorder %s26, 1
      %p196 = por %p194, %p195
      %p197 = scmp.ne.s32.totalorder %s186, %s187
      %p198 = scmp.eq.s32.totalorder %s26, 0
      %p199 = por %p197, %p198
      %p200 = scmp.ne.s32.totalorder %s186, %s187
      %p201 = scmp.eq.s32.totalorder %s27, 1
      %p202 = por %p200, %p201
      %p204 = scmp.ne.s32.totalorder %s187, %s203
      %p205 = scmp.eq.s32.totalorder %s27, 0
      %p206 = por %p204, %p205
      %p207 = scmp.le.s32.totalorder 1, %s21
      %p208 = scmp.lt.s32.totalorder %s21, 3
      %p209 = pnand %p207, %p208
      %p210 = pneg %p209
      // Predicated region
      $region9: #{tpu_custom_call.1} parent=5 // pred_check
        _
      $region10: #{tpu_custom_call.1} parent=5 // pred_check_branch
        %212 = sbr.rel (%p209) target = $region12
      $region11: #{tpu_custom_call.1} parent=5 // pred_region
        %s213 = ssub.s32 %s21, 1
        // Predicated region
        $region13: #{tpu_custom_call.1} parent=11 // pred_check
          %p214 = pneg %p68
        $region14: #{tpu_custom_call.1} parent=11 // pred_check_branch
          %216 = sbr.rel (%p214) target = $region16
        $region15: #{tpu_custom_call.1} parent=11 // pred_region
          %s218 = ssub.s32 1024, 1024
          %219 = vsyncadd [#allocation6], %s218
          %s220 = sshll.u32 [#allocation5], 4
          %s221 = int_to_ptr.vmem [resolvable:$true] %s220
          %226 = dma.hbm_to_vmem [thread:$0]  %s1, 1024, %s221, [#allocation6], 64, 64, 4
        $region16: #{tpu_custom_call.1} parent=11 // pred_fallthru
          _
        // Predicated region
        $region17: #{tpu_custom_call.1} parent=11 // pred_check
          %p227 = pneg %p89
        $region18: #{tpu_custom_call.1} parent=11 // pred_check_branch
          %229 = sbr.rel (%p227) target = $region20
        $region19: #{tpu_custom_call.1} parent=11 // pred_region
          _
        $region20: #{tpu_custom_call.1} parent=11 // pred_fallthru
          _
        // Predicated region
        $region21: #{tpu_custom_call.1} parent=11 // pred_check
          %p230 = pneg %p110
        $region22: #{tpu_custom_call.1} parent=11 // pred_check_branch
          %232 = sbr.rel (%p230) target = $region24
        $region23: #{tpu_custom_call.1} parent=11 // pred_region
          %s234 = ssub.s32 9216, 9216
          %235 = vsyncadd [#allocation6], %s234
          %s236 = sshll.u32 [#allocation7], 4
          %s237 = int_to_ptr.vmem [resolvable:$true] %s236
          %242 = dma.hbm_to_vmem [thread:$0]  %s3, 9216, %s237, [#allocation6], 576, 576, 36
        $region24: #{tpu_custom_call.1} parent=11 // pred_fallthru
          _
        // Predicated region
        $region25: #{tpu_custom_call.1} parent=11 // pred_check
          %p243 = pneg %p131
        $region26: #{tpu_custom_call.1} parent=11 // pred_check_branch
          %245 = sbr.rel (%p243) target = $region28
        $region27: #{tpu_custom_call.1} parent=11 // pred_region
          _
        $region28: #{tpu_custom_call.1} parent=11 // pred_fallthru
          _
        // Predicated region
        $region29: #{tpu_custom_call.1} parent=11 // pred_check
          %p246 = pneg %p152
        $region30: #{tpu_custom_call.1} parent=11 // pred_check_branch
          %248 = sbr.rel (%p246) target = $region32
        $region31: #{tpu_custom_call.1} parent=11 // pred_region
          %s250 = ssub.s32 1024, 1024
          %251 = vsyncadd [#allocation9], %s250
          %s252 = sshll.u32 [#allocation8], 4
          %s253 = int_to_ptr.vmem [resolvable:$true] %s252
          %258 = dma.hbm_to_vmem [thread:$0]  %s5, 1024, %s253, [#allocation9], 64, 64, 4
        $region32: #{tpu_custom_call.1} parent=11 // pred_fallthru
          _
        // Predicated region
        $region33: #{tpu_custom_call.1} parent=11 // pred_check
          %p259 = pneg %p173
        $region34: #{tpu_custom_call.1} parent=11 // pred_check_branch
          %261 = sbr.rel (%p259) target = $region36
        $region35: #{tpu_custom_call.1} parent=11 // pred_region
          _
        $region36: #{tpu_custom_call.1} parent=11 // pred_fallthru
          _
      $region12: #{tpu_custom_call.1} parent=5 // pred_fallthru
        _
      %p262 = scmp.lt.s32.totalorder %s21, 2
      // Predicated region
      $region37: #{tpu_custom_call.1} parent=5 // pred_check
        %p263 = pneg %p262
      $region38: #{tpu_custom_call.1} parent=5 // pred_check_branch
        %265 = sbr.rel (%p263) target = $region40
      $region39: #{tpu_custom_call.1} parent=5 // pred_region
        // Predicated region
        $region41: #{tpu_custom_call.1} parent=39 // pred_check
          %p266 = pneg %p41
        $region42: #{tpu_custom_call.1} parent=39 // pred_check_branch
          %268 = sbr.rel (%p266) target = $region44
        $region43: #{tpu_custom_call.1} parent=39 // pred_region
          %s269 = sand.u32 %s31, 1
          %s270 = scalar_lea.sflag [#allocation3], %s269
          %s271 = sand.u32 %s31, 1
          %s272 = smul.addr %s271, 128
          %s273 = scalar_lea.vmem [#allocation2], %s272
          %s275 = ssub.s32 2048, 2048
          %276 = vsyncadd %s270, %s275
          %s277 = smul.addr %s21, 16
          %s278 = smul.addr %s277, 128
          %s279 = scalar_lea.hbm %s0, %s278
          %s280 = sshll.u32 %s273, 4
          %s281 = int_to_ptr.vmem [resolvable:$true] %s280
          %286 = dma.hbm_to_vmem [thread:$0]  %s279, 2048, %s281, %s270, 128, 128, 8
        $region44: #{tpu_custom_call.1} parent=39 // pred_fallthru
          _
      $region40: #{tpu_custom_call.1} parent=5 // pred_fallthru
        _
      %p287 = scmp.le.s32.totalorder 1, %s21
      %p288 = scmp.lt.s32.totalorder %s21, 3
      %p289 = pnand %p287, %p288
      %p290 = pneg %p289
      // Predicated region
      $region45: #{tpu_custom_call.1} parent=5 // pred_check
        _
      $region46: #{tpu_custom_call.1} parent=5 // pred_check_branch
        %292 = sbr.rel (%p289) target = $region48
      $region47: #{tpu_custom_call.1} parent=5 // pred_region
        %s293 = ssub.s32 %s21, 1
        %s294 = sand.u32 %s34, 1
        %s295 = scalar_lea.sflag [#allocation3], %s294
        %s296 = sand.u32 %s34, 1
        %s297 = smul.addr %s296, 128
        %s298 = scalar_lea.vmem [#allocation2], %s297
        // Predicated region
        $region49: #{tpu_custom_call.1} parent=47 // pred_check
          %p299 = pneg %p47
        $region50: #{tpu_custom_call.1} parent=47 // pred_check_branch
          %301 = sbr.rel (%p299) target = $region52
        $region51: #{tpu_custom_call.1} parent=47 // pred_region
          %302 = dma.done %s295, 2048
        $region52: #{tpu_custom_call.1} parent=47 // pred_fallthru
          _
        // Predicated region
        $region53: #{tpu_custom_call.1} parent=47 // pred_check
          %p303 = pneg %p68
        $region54: #{tpu_custom_call.1} parent=47 // pred_check_branch
          %305 = sbr.rel (%p303) target = $region56
        $region55: #{tpu_custom_call.1} parent=47 // pred_region
          %306 = dma.done [#allocation6], 1024
        $region56: #{tpu_custom_call.1} parent=47 // pred_fallthru
          _
        // Predicated region
        $region57: #{tpu_custom_call.1} parent=47 // pred_check
          %p307 = pneg %p110
        $region58: #{tpu_custom_call.1} parent=47 // pred_check_branch
          %309 = sbr.rel (%p307) target = $region60
        $region59: #{tpu_custom_call.1} parent=47 // pred_region
          %310 = dma.done [#allocation6], 9216
        $region60: #{tpu_custom_call.1} parent=47 // pred_fallthru
          _
        // Predicated region
        $region61: #{tpu_custom_call.1} parent=47 // pred_check
          %p311 = pneg %p152
        $region62: #{tpu_custom_call.1} parent=47 // pred_check_branch
          %313 = sbr.rel (%p311) target = $region64
        $region63: #{tpu_custom_call.1} parent=47 // pred_region
          %314 = dma.done [#allocation9], 1024
        $region64: #{tpu_custom_call.1} parent=47 // pred_fallthru
          _
        %s315 = sand.u32 %s34, 1
        %s316 = scalar_lea.sflag [#allocation3], %s315
        %s317 = sand.u32 %s34, 1
        %s318 = smul.addr %s317, 128
        %s319 = scalar_lea.vmem [#allocation2], %s318
        %p320 = pneg %p47
        %p321 = pneg %p44
        %p322 = pneg %p68
        %p323 = pneg %p65
        %p324 = pneg %p89
        %p325 = pneg %p86
        %p326 = pneg %p110
        %p327 = pneg %p107
        %p328 = pneg %p131
        %p329 = pneg %p128
        %p330 = pneg %p152
        %p331 = pneg %p149
        %p332 = pneg %p173
        %p333 = pneg %p170
        %p334 = pneg %p199
        %p335 = pneg %p196
        %s336 = sand.u32 %s186, 1
        %s337 = scalar_lea.sflag [#allocation4], %s336
        %s338 = sand.u32 %s186, 1
        %s339 = smul.addr %s338, 128
        %s340 = scalar_lea.vmem [#allocation10], %s339
        %v342 = vld [vmem:[%s298] sm:$0xff]
        %v343 = vld [vmem:[%s298 + $0x8] sm:$0xff]
        %v344 = vld [vmem:[%s298 + $0x10] sm:$0xff]
        %v345 = vld [vmem:[%s298 + $0x18] sm:$0xff]
        %v346 = vld [vmem:[%s298 + $0x20] sm:$0xff]
        %v347 = vld [vmem:[%s298 + $0x28] sm:$0xff]
        %v348 = vld [vmem:[%s298 + $0x30] sm:$0xff]
        %v349 = vld [vmem:[%s298 + $0x38] sm:$0xff]
        %v350 = vld [vmem:[%s298 + $0x40] sm:$0xff]
        %v351 = vld [vmem:[%s298 + $0x48] sm:$0xff]
        %v352 = vld [vmem:[%s298 + $0x50] sm:$0xff]
        %v353 = vld [vmem:[%s298 + $0x58] sm:$0xff]
        %v354 = vld [vmem:[%s298 + $0x60] sm:$0xff]
        %v355 = vld [vmem:[%s298 + $0x68] sm:$0xff]
        %v356 = vld [vmem:[%s298 + $0x70] sm:$0xff]
        %v357 = vld [vmem:[%s298 + $0x78] sm:$0xff]
        %v366 = vrot.slane %v355, 4
        %v367 = vrot.slane %v357, 4
        %v368 = vrot.slane %v343, 4
        %v369 = vrot.slane %v345, 4
        %v370 = vrot.slane %v347, 4
        %v371 = vrot.slane %v349, 4
        %v372 = vrot.slane %v351, 4
        %v373 = vrot.slane %v353, 4
        %vm390 = vcmask 1043456
        %v391 = vrot.slane %v354, 4
        %v392 = vsel %vm390, %v391, %v366
        %v393 = vrot.slane %v356, 4
        %v394 = vsel %vm390, %v393, %v367
        %v395 = vrot.slane %v342, 4
        %v396 = vsel %vm390, %v395, %v368
        %v397 = vrot.slane %v344, 4
        %v398 = vsel %vm390, %v397, %v369
        %v399 = vrot.slane %v346, 4
        %v400 = vsel %vm390, %v399, %v370
        %v401 = vrot.slane %v348, 4
        %v402 = vsel %vm390, %v401, %v371
        %v403 = vrot.slane %v350, 4
        %v404 = vsel %vm390, %v403, %v372
        %v405 = vrot.slane %v352, 4
        %v406 = vsel %vm390, %v405, %v373
        %v423 = vsel %vm390, %v366, %v391
        %v424 = vsel %vm390, %v367, %v393
        %v425 = vsel %vm390, %v368, %v395
        %v426 = vsel %vm390, %v369, %v397
        %v427 = vsel %vm390, %v370, %v399
        %v428 = vsel %vm390, %v371, %v401
        %v429 = vsel %vm390, %v372, %v403
        %v430 = vsel %vm390, %v373, %v405
        %v431 = vpack.c.bf16 %v392, %v423
        %v432 = vpack.c.bf16 %v394, %v424
        %v433 = vpack.c.bf16 %v396, %v425
        %v434 = vpack.c.bf16 %v398, %v426
        %v435 = vpack.c.bf16 %v400, %v427
        %v436 = vpack.c.bf16 %v402, %v428
        %v437 = vpack.c.bf16 %v404, %v429
        %v438 = vpack.c.bf16 %v406, %v430
        %v439 = vld [vmem:[#allocation5] sm:$0xf]
        %v440 = vld [vmem:[#allocation5 + $0x4] sm:$0xf]
        %v441 = vld [vmem:[#allocation5 + $0x8] sm:$0xf]
        %v442 = vld [vmem:[#allocation5 + $0xc] sm:$0xf]
        %v443 = vld [vmem:[#allocation5 + $0x10] sm:$0xf]
        %v444 = vld [vmem:[#allocation5 + $0x14] sm:$0xf]
        %v445 = vld [vmem:[#allocation5 + $0x18] sm:$0xf]
        %v446 = vld [vmem:[#allocation5 + $0x1c] sm:$0xf]
        %v447 = vld [vmem:[#allocation5 + $0x20] sm:$0xf]
        %v448 = vld [vmem:[#allocation5 + $0x24] sm:$0xf]
        %v449 = vld [vmem:[#allocation5 + $0x28] sm:$0xf]
        %v450 = vld [vmem:[#allocation5 + $0x2c] sm:$0xf]
        %v451 = vld [vmem:[#allocation5 + $0x30] sm:$0xf]
        %v452 = vld [vmem:[#allocation5 + $0x34] sm:$0xf]
        %v453 = vld [vmem:[#allocation5 + $0x38] sm:$0xf]
        %v454 = vld [vmem:[#allocation5 + $0x3c] sm:$0xf]
        %v455 = vld [vmem:[%s2] sm:$0x1]
        %v457 = vlaneseq
        %v458 = vshrl.u32 %v457, 7
        %v459 = vsub.s32 0, %v458
        %v460 = vrot.slane %v455, %v459
        %v478 = vunpack.c.l.b16 %v439
        %v479 = vunpack.c.l.b16 %v440
        %v480 = vunpack.c.l.b16 %v441
        %v481 = vunpack.c.l.b16 %v442
        %v482 = vunpack.c.l.b16 %v443
        %v483 = vunpack.c.l.b16 %v444
        %v484 = vunpack.c.l.b16 %v445
        %v485 = vunpack.c.l.b16 %v446
        %v486 = vunpack.c.l.b16 %v447
        %v487 = vunpack.c.l.b16 %v448
        %v488 = vunpack.c.l.b16 %v449
        %v489 = vunpack.c.l.b16 %v450
        %v490 = vunpack.c.l.b16 %v451
        %v491 = vunpack.c.l.b16 %v452
        %v492 = vunpack.c.l.b16 %v453
        %v493 = vunpack.c.l.b16 %v454
        %v494 = vpack.c.b16 %v479, %v478
        %v495 = vpack.c.b16 %v481, %v480
        %v496 = vpack.c.b16 %v483, %v482
        %v497 = vpack.c.b16 %v485, %v484
        %v498 = vpack.c.b16 %v487, %v486
        %v499 = vpack.c.b16 %v489, %v488
        %v500 = vpack.c.b16 %v491, %v490
        %v501 = vpack.c.b16 %v493, %v492
        %510 = vmatprep.subr.bf16.mxu0 0
        %511 = vmatpush1.bf16.msra.mxu0 %v501
        %512 = vmatprep.subr.bf16.mxu0 0
        %513 = vmatpush1.bf16.msra.mxu0 %v500
        %514 = vmatprep.subr.bf16.mxu0 0
        %515 = vmatpush1.bf16.msra.mxu0 %v499
        %516 = vmatprep.subr.bf16.mxu0 0
        %517 = vmatpush1.bf16.msra.mxu0 %v498
        %518 = vmatprep.subr.bf16.mxu0 0
        %519 = vmatpush1.bf16.msra.mxu0 %v497
        %520 = vmatprep.subr.bf16.mxu0 0
        %521 = vmatpush1.bf16.msra.mxu0 %v496
        %522 = vmatprep.subr.bf16.mxu0 0
        %523 = vmatpush1.bf16.msra.mxu0 %v495
        %524 = vmatprep.subr.bf16.mxu0 0
        %525 = vmatpush1.bf16.msra.mxu0 %v494
        %526 = vmatprep.subr.bf16.mxu0 0
        %527 = vmatpush2.bf16.msra.mxu0 0
        %528 = vmatprep.subr.bf16.mxu0 0
        %529 = vmatpush2.bf16.msra.mxu0 0
        %530 = vmatprep.subr.bf16.mxu0 0
        %531 = vmatpush2.bf16.msra.mxu0 0
        %532 = vmatprep.subr.bf16.mxu0 0
        %533 = vmatpush2.bf16.msra.mxu0 0
        %534 = vmatprep.subr.bf16.mxu0 0
        %535 = vmatpush2.bf16.msra.mxu0 0
        %536 = vmatprep.subr.bf16.mxu0 0
        %537 = vmatpush2.bf16.msra.mxu0 0
        %538 = vmatprep.subr.bf16.mxu0 0
        %539 = vmatpush2.bf16.msra.mxu0 0
        %540 = vmatprep.subr.bf16.mxu0 0
        %541 = vmatpush2.bf16.msra.mxu0 0
        %542 = vmatprep.mubr.bf16.mxu0 0
        %543 = vmatmul.mubr.bf16.gmra.mxu0 %v431
        %v544 = vpop.f32.mrf.mxu0
        %v545 = vadd.f32 %v460, %v544
        %v546 = vpop.f32.mrf.mxu0
        %v547 = vpop.f32.mrf.mxu0
        %v548 = vadd.f32 %v460, %v547
        %v549 = vpop.f32.mrf.mxu0
        %550 = vmatprep.mubr.bf16.mxu0 0
        %551 = vmatmul.mubr.bf16.gmra.mxu0 %v432
        %v552 = vpop.f32.mrf.mxu0
        %v553 = vadd.f32 %v460, %v552
        %v554 = vpop.f32.mrf.mxu0
        %v555 = vpop.f32.mrf.mxu0
        %v556 = vadd.f32 %v460, %v555
        %v557 = vpop.f32.mrf.mxu0
        %558 = vmatprep.mubr.bf16.mxu0 0
        %559 = vmatmul.mubr.bf16.gmra.mxu0 %v433
        %v560 = vpop.f32.mrf.mxu0
        %v561 = vadd.f32 %v460, %v560
        %v562 = vpop.f32.mrf.mxu0
        %v563 = vpop.f32.mrf.mxu0
        %v564 = vadd.f32 %v460, %v563
        %v565 = vpop.f32.mrf.mxu0
        %566 = vmatprep.mubr.bf16.mxu0 0
        %567 = vmatmul.mubr.bf16.gmra.mxu0 %v434
        %v568 = vpop.f32.mrf.mxu0
        %v569 = vadd.f32 %v460, %v568
        %v570 = vpop.f32.mrf.mxu0
        %v571 = vpop.f32.mrf.mxu0
        %v572 = vadd.f32 %v460, %v571
        %v573 = vpop.f32.mrf.mxu0
        %574 = vmatprep.mubr.bf16.mxu0 0
        %575 = vmatmul.mubr.bf16.gmra.mxu0 %v435
        %v576 = vpop.f32.mrf.mxu0
        %v577 = vadd.f32 %v460, %v576
        %v578 = vpop.f32.mrf.mxu0
        %v579 = vpop.f32.mrf.mxu0
        %v580 = vadd.f32 %v460, %v579
        %v581 = vpop.f32.mrf.mxu0
        %582 = vmatprep.mubr.bf16.mxu0 0
        %583 = vmatmul.mubr.bf16.gmra.mxu0 %v436
        %v584 = vpop.f32.mrf.mxu0
        %v585 = vadd.f32 %v460, %v584
        %v586 = vpop.f32.mrf.mxu0
        %v587 = vpop.f32.mrf.mxu0
        %v588 = vadd.f32 %v460, %v587
        %v589 = vpop.f32.mrf.mxu0
        %590 = vmatprep.mubr.bf16.mxu0 0
        %591 = vmatmul.mubr.bf16.gmra.mxu0 %v437
        %v592 = vpop.f32.mrf.mxu0
        %v593 = vadd.f32 %v460, %v592
        %v594 = vpop.f32.mrf.mxu0
        %v595 = vpop.f32.mrf.mxu0
        %v596 = vadd.f32 %v460, %v595
        %v597 = vpop.f32.mrf.mxu0
        %598 = vmatprep.mubr.bf16.mxu0 0
        %599 = vmatmul.mubr.bf16.gmra.mxu0 %v438
        %v600 = vpop.f32.mrf.mxu0
        %v601 = vadd.f32 %v460, %v600
        %v602 = vpop.f32.mrf.mxu0
        %v603 = vpop.f32.mrf.mxu0
        %v604 = vadd.f32 %v460, %v603
        %v605 = vpop.f32.mrf.mxu0
        %606 = vdwg.mxu0
        %v607 = vpack.c.bf16 %v548, %v545
        %v608 = vpack.c.bf16 %v556, %v553
        %v609 = vpack.c.bf16 %v564, %v561
        %v610 = vpack.c.bf16 %v572, %v569
        %v611 = vpack.c.bf16 %v580, %v577
        %v612 = vpack.c.bf16 %v588, %v585
        %v613 = vpack.c.bf16 %v596, %v593
        %v614 = vpack.c.bf16 %v604, %v601
        %v615 = vld [vmem:[#allocation7] sm:$0xff]
        %v616 = vld [vmem:[#allocation7 + $0x8] sm:$0xff]
        %v617 = vld [vmem:[#allocation7 + $0x10] sm:$0xff]
        %v618 = vld [vmem:[#allocation7 + $0x18] sm:$0xff]
        %v619 = vld [vmem:[#allocation7 + $0x20] sm:$0xf]
        %v620 = vld [vmem:[#allocation7 + $0x24] sm:$0xff]
        %v621 = vld [vmem:[#allocation7 + $0x2c] sm:$0xff]
        %v622 = vld [vmem:[#allocation7 + $0x34] sm:$0xff]
        %v623 = vld [vmem:[#allocation7 + $0x3c] sm:$0xff]
        %v624 = vld [vmem:[#allocation7 + $0x44] sm:$0xf]
        %v625 = vld [vmem:[#allocation7 + $0x48] sm:$0xff]
        %v626 = vld [vmem:[#allocation7 + $0x50] sm:$0xff]
        %v627 = vld [vmem:[#allocation7 + $0x58] sm:$0xff]
        %v628 = vld [vmem:[#allocation7 + $0x60] sm:$0xff]
        %v629 = vld [vmem:[#allocation7 + $0x68] sm:$0xf]
        %v630 = vld [vmem:[#allocation7 + $0x6c] sm:$0xff]
        %v631 = vld [vmem:[#allocation7 + $0x74] sm:$0xff]
        %v632 = vld [vmem:[#allocation7 + $0x7c] sm:$0xff]
        %v633 = vld [vmem:[#allocation7 + $0x84] sm:$0xff]
        %v634 = vld [vmem:[#allocation7 + $0x8c] sm:$0xf]
        %v635 = vld [vmem:[#allocation7 + $0x90] sm:$0xff]
        %v636 = vld [vmem:[#allocation7 + $0x98] sm:$0xff]
        %v637 = vld [vmem:[#allocation7 + $0xa0] sm:$0xff]
        %v638 = vld [vmem:[#allocation7 + $0xa8] sm:$0xff]
        %v639 = vld [vmem:[#allocation7 + $0xb0] sm:$0xf]
        %v640 = vld [vmem:[#allocation7 + $0xb4] sm:$0xff]
        %v641 = vld [vmem:[#allocation7 + $0xbc] sm:$0xff]
        %v642 = vld [vmem:[#allocation7 + $0xc4] sm:$0xff]
        %v643 = vld [vmem:[#allocation7 + $0xcc] sm:$0xff]
        %v644 = vld [vmem:[#allocation7 + $0xd4] sm:$0xf]
        %v645 = vld [vmem:[#allocation7 + $0xd8] sm:$0xff]
        %v646 = vld [vmem:[#allocation7 + $0xe0] sm:$0xff]
        %v647 = vld [vmem:[#allocation7 + $0xe8] sm:$0xff]
        %v648 = vld [vmem:[#allocation7 + $0xf0] sm:$0xff]
        %v649 = vld [vmem:[#allocation7 + $0xf8] sm:$0xf]
        %v650 = vld [vmem:[#allocation7 + $0xfc] sm:$0xff]
        %v651 = vld [vmem:[#allocation7 + $0x104] sm:$0xff]
        %v652 = vld [vmem:[#allocation7 + $0x10c] sm:$0xff]
        %v653 = vld [vmem:[#allocation7 + $0x114] sm:$0xff]
        %v654 = vld [vmem:[#allocation7 + $0x11c] sm:$0xf]
        %v655 = vld [vmem:[#allocation7 + $0x120] sm:$0xff]
        %v656 = vld [vmem:[#allocation7 + $0x128] sm:$0xff]
        %v657 = vld [vmem:[#allocation7 + $0x130] sm:$0xff]
        %v658 = vld [vmem:[#allocation7 + $0x138] sm:$0xff]
        %v659 = vld [vmem:[#allocation7 + $0x140] sm:$0xf]
        %v660 = vld [vmem:[#allocation7 + $0x144] sm:$0xff]
        %v661 = vld [vmem:[#allocation7 + $0x14c] sm:$0xff]
        %v662 = vld [vmem:[#allocation7 + $0x154] sm:$0xff]
        %v663 = vld [vmem:[#allocation7 + $0x15c] sm:$0xff]
        %v664 = vld [vmem:[#allocation7 + $0x164] sm:$0xf]
        %v665 = vld [vmem:[#allocation7 + $0x168] sm:$0xff]
        %v666 = vld [vmem:[#allocation7 + $0x170] sm:$0xff]
        %v667 = vld [vmem:[#allocation7 + $0x178] sm:$0xff]
        %v668 = vld [vmem:[#allocation7 + $0x180] sm:$0xff]
        %v669 = vld [vmem:[#allocation7 + $0x188] sm:$0xf]
        %v670 = vld [vmem:[#allocation7 + $0x18c] sm:$0xff]
        %v671 = vld [vmem:[#allocation7 + $0x194] sm:$0xff]
        %v672 = vld [vmem:[#allocation7 + $0x19c] sm:$0xff]
        %v673 = vld [vmem:[#allocation7 + $0x1a4] sm:$0xff]
        %v674 = vld [vmem:[#allocation7 + $0x1ac] sm:$0xf]
        %v675 = vld [vmem:[#allocation7 + $0x1b0] sm:$0xff]
        %v676 = vld [vmem:[#allocation7 + $0x1b8] sm:$0xff]
        %v677 = vld [vmem:[#allocation7 + $0x1c0] sm:$0xff]
        %v678 = vld [vmem:[#allocation7 + $0x1c8] sm:$0xff]
        %v679 = vld [vmem:[#allocation7 + $0x1d0] sm:$0xf]
        %v680 = vld [vmem:[#allocation7 + $0x1d4] sm:$0xff]
        %v681 = vld [vmem:[#allocation7 + $0x1dc] sm:$0xff]
        %v682 = vld [vmem:[#allocation7 + $0x1e4] sm:$0xff]
        %v683 = vld [vmem:[#allocation7 + $0x1ec] sm:$0xff]
        %v684 = vld [vmem:[#allocation7 + $0x1f4] sm:$0xf]
        %v685 = vld [vmem:[#allocation7 + $0x1f8] sm:$0xff]
        %v686 = vld [vmem:[#allocation7 + $0x200] sm:$0xff]
        %v687 = vld [vmem:[#allocation7 + $0x208] sm:$0xff]
        %v688 = vld [vmem:[#allocation7 + $0x210] sm:$0xff]
        %v689 = vld [vmem:[#allocation7 + $0x218] sm:$0xf]
        %v690 = vld [vmem:[#allocation7 + $0x21c] sm:$0xff]
        %v691 = vld [vmem:[#allocation7 + $0x224] sm:$0xff]
        %v692 = vld [vmem:[#allocation7 + $0x22c] sm:$0xff]
        %v693 = vld [vmem:[#allocation7 + $0x234] sm:$0xff]
        %v694 = vld [vmem:[#allocation7 + $0x23c] sm:$0xf]
        %v775 = vunpack.c.l.b16 %v615
        %v776 = vunpack.c.h.b16 %v615
        %v777 = vunpack.c.l.b16 %v616
        %v778 = vunpack.c.h.b16 %v616
        %v779 = vunpack.c.l.b16 %v617
        %v780 = vunpack.c.h.b16 %v617
        %v781 = vunpack.c.l.b16 %v618
        %v782 = vunpack.c.h.b16 %v618
        %v783 = vunpack.c.l.b16 %v619
        %v784 = vunpack.c.l.b16 %v620
        %v785 = vunpack.c.h.b16 %v620
        %v786 = vunpack.c.l.b16 %v621
        %v787 = vunpack.c.h.b16 %v621
        %v788 = vunpack.c.l.b16 %v622
        %v789 = vunpack.c.h.b16 %v622
        %v790 = vunpack.c.l.b16 %v623
        %v791 = vunpack.c.h.b16 %v623
        %v792 = vunpack.c.l.b16 %v624
        %v793 = vunpack.c.l.b16 %v625
        %v794 = vunpack.c.h.b16 %v625
        %v795 = vunpack.c.l.b16 %v626
        %v796 = vunpack.c.h.b16 %v626
        %v797 = vunpack.c.l.b16 %v627
        %v798 = vunpack.c.h.b16 %v627
        %v799 = vunpack.c.l.b16 %v628
        %v800 = vunpack.c.h.b16 %v628
        %v801 = vunpack.c.l.b16 %v629
        %v802 = vunpack.c.l.b16 %v630
        %v803 = vunpack.c.h.b16 %v630
        %v804 = vunpack.c.l.b16 %v631
        %v805 = vunpack.c.h.b16 %v631
        %v806 = vunpack.c.l.b16 %v632
        %v807 = vunpack.c.h.b16 %v632
        %v808 = vunpack.c.l.b16 %v633
        %v809 = vunpack.c.h.b16 %v633
        %v810 = vunpack.c.l.b16 %v634
        %v811 = vunpack.c.l.b16 %v635
        %v812 = vunpack.c.h.b16 %v635
        %v813 = vunpack.c.l.b16 %v636
        %v814 = vunpack.c.h.b16 %v636
        %v815 = vunpack.c.l.b16 %v637
        %v816 = vunpack.c.h.b16 %v637
        %v817 = vunpack.c.l.b16 %v638
        %v818 = vunpack.c.h.b16 %v638
        %v819 = vunpack.c.l.b16 %v639
        %v820 = vunpack.c.l.b16 %v640
        %v821 = vunpack.c.h.b16 %v640
        %v822 = vunpack.c.l.b16 %v641
        %v823 = vunpack.c.h.b16 %v641
        %v824 = vunpack.c.l.b16 %v642
        %v825 = vunpack.c.h.b16 %v642
        %v826 = vunpack.c.l.b16 %v643
        %v827 = vunpack.c.h.b16 %v643
        %v828 = vunpack.c.l.b16 %v644
        %v829 = vunpack.c.l.b16 %v645
        %v830 = vunpack.c.h.b16 %v645
        %v831 = vunpack.c.l.b16 %v646
        %v832 = vunpack.c.h.b16 %v646
        %v833 = vunpack.c.l.b16 %v647
        %v834 = vunpack.c.h.b16 %v647
        %v835 = vunpack.c.l.b16 %v648
        %v836 = vunpack.c.h.b16 %v648
        %v837 = vunpack.c.l.b16 %v649
        %v838 = vunpack.c.l.b16 %v650
        %v839 = vunpack.c.h.b16 %v650
        %v840 = vunpack.c.l.b16 %v651
        %v841 = vunpack.c.h.b16 %v651
        %v842 = vunpack.c.l.b16 %v652
        %v843 = vunpack.c.h.b16 %v652
        %v844 = vunpack.c.l.b16 %v653
        %v845 = vunpack.c.h.b16 %v653
        %v846 = vunpack.c.l.b16 %v654
        %v847 = vunpack.c.l.b16 %v655
        %v848 = vunpack.c.h.b16 %v655
        %v849 = vunpack.c.l.b16 %v656
        %v850 = vunpack.c.h.b16 %v656
        %v851 = vunpack.c.l.b16 %v657
        %v852 = vunpack.c.h.b16 %v657
        %v853 = vunpack.c.l.b16 %v658
        %v854 = vunpack.c.h.b16 %v658
        %v855 = vunpack.c.l.b16 %v659
        %v856 = vunpack.c.l.b16 %v660
        %v857 = vunpack.c.h.b16 %v660
        %v858 = vunpack.c.l.b16 %v661
        %v859 = vunpack.c.h.b16 %v661
        %v860 = vunpack.c.l.b16 %v662
        %v861 = vunpack.c.h.b16 %v662
        %v862 = vunpack.c.l.b16 %v663
        %v863 = vunpack.c.h.b16 %v663
        %v864 = vunpack.c.l.b16 %v664
        %v865 = vunpack.c.l.b16 %v665
        %v866 = vunpack.c.h.b16 %v665
        %v867 = vunpack.c.l.b16 %v666
        %v868 = vunpack.c.h.b16 %v666
        %v869 = vunpack.c.l.b16 %v667
        %v870 = vunpack.c.h.b16 %v667
        %v871 = vunpack.c.l.b16 %v668
        %v872 = vunpack.c.h.b16 %v668
        %v873 = vunpack.c.l.b16 %v669
        %v874 = vunpack.c.l.b16 %v670
        %v875 = vunpack.c.h.b16 %v670
        %v876 = vunpack.c.l.b16 %v671
        %v877 = vunpack.c.h.b16 %v671
        %v878 = vunpack.c.l.b16 %v672
        %v879 = vunpack.c.h.b16 %v672
        %v880 = vunpack.c.l.b16 %v673
        %v881 = vunpack.c.h.b16 %v673
        %v882 = vunpack.c.l.b16 %v674
        %v883 = vunpack.c.l.b16 %v675
        %v884 = vunpack.c.h.b16 %v675
        %v885 = vunpack.c.l.b16 %v676
        %v886 = vunpack.c.h.b16 %v676
        %v887 = vunpack.c.l.b16 %v677
        %v888 = vunpack.c.h.b16 %v677
        %v889 = vunpack.c.l.b16 %v678
        %v890 = vunpack.c.h.b16 %v678
        %v891 = vunpack.c.l.b16 %v679
        %v892 = vunpack.c.l.b16 %v680
        %v893 = vunpack.c.h.b16 %v680
        %v894 = vunpack.c.l.b16 %v681
        %v895 = vunpack.c.h.b16 %v681
        %v896 = vunpack.c.l.b16 %v682
        %v897 = vunpack.c.h.b16 %v682
        %v898 = vunpack.c.l.b16 %v683
        %v899 = vunpack.c.h.b16 %v683
        %v900 = vunpack.c.l.b16 %v684
        %v901 = vunpack.c.l.b16 %v685
        %v902 = vunpack.c.h.b16 %v685
        %v903 = vunpack.c.l.b16 %v686
        %v904 = vunpack.c.h.b16 %v686
        %v905 = vunpack.c.l.b16 %v687
        %v906 = vunpack.c.h.b16 %v687
        %v907 = vunpack.c.l.b16 %v688
        %v908 = vunpack.c.h.b16 %v688
        %v909 = vunpack.c.l.b16 %v689
        %v910 = vunpack.c.l.b16 %v690
        %v911 = vunpack.c.h.b16 %v690
        %v912 = vunpack.c.l.b16 %v691
        %v913 = vunpack.c.h.b16 %v691
        %v914 = vunpack.c.l.b16 %v692
        %v915 = vunpack.c.h.b16 %v692
        %v916 = vunpack.c.l.b16 %v693
        %v917 = vunpack.c.h.b16 %v693
        %v918 = vunpack.c.l.b16 %v694
        %v919 = vpack.c.b16 %v784, %v775
        %v920 = vpack.c.b16 %v785, %v776
        %v921 = vpack.c.b16 %v786, %v777
        %v922 = vpack.c.b16 %v787, %v778
        %v923 = vpack.c.b16 %v788, %v779
        %v924 = vpack.c.b16 %v789, %v780
        %v925 = vpack.c.b16 %v790, %v781
        %v926 = vpack.c.b16 %v791, %v782
        %v927 = vpack.c.b16 %v792, %v783
        %v928 = vpack.c.b16 %v802, %v793
        %v929 = vpack.c.b16 %v803, %v794
        %v930 = vpack.c.b16 %v804, %v795
        %v931 = vpack.c.b16 %v805, %v796
        %v932 = vpack.c.b16 %v806, %v797
        %v933 = vpack.c.b16 %v807, %v798
        %v934 = vpack.c.b16 %v808, %v799
        %v935 = vpack.c.b16 %v809, %v800
        %v936 = vpack.c.b16 %v810, %v801
        %v937 = vpack.c.b16 %v820, %v811
        %v938 = vpack.c.b16 %v821, %v812
        %v939 = vpack.c.b16 %v822, %v813
        %v940 = vpack.c.b16 %v823, %v814
        %v941 = vpack.c.b16 %v824, %v815
        %v942 = vpack.c.b16 %v825, %v816
        %v943 = vpack.c.b16 %v826, %v817
        %v944 = vpack.c.b16 %v827, %v818
        %v945 = vpack.c.b16 %v828, %v819
        %v946 = vpack.c.b16 %v838, %v829
        %v947 = vpack.c.b16 %v839, %v830
        %v948 = vpack.c.b16 %v840, %v831
        %v949 = vpack.c.b16 %v841, %v832
        %v950 = vpack.c.b16 %v842, %v833
        %v951 = vpack.c.b16 %v843, %v834
        %v952 = vpack.c.b16 %v844, %v835
        %v953 = vpack.c.b16 %v845, %v836
        %v954 = vpack.c.b16 %v846, %v837
        %v955 = vpack.c.b16 %v856, %v847
        %v956 = vpack.c.b16 %v857, %v848
        %v957 = vpack.c.b16 %v858, %v849
        %v958 = vpack.c.b16 %v859, %v850
        %v959 = vpack.c.b16 %v860, %v851
        %v960 = vpack.c.b16 %v861, %v852
        %v961 = vpack.c.b16 %v862, %v853
        %v962 = vpack.c.b16 %v863, %v854
        %v963 = vpack.c.b16 %v864, %v855
        %v964 = vpack.c.b16 %v874, %v865
        %v965 = vpack.c.b16 %v875, %v866
        %v966 = vpack.c.b16 %v876, %v867
        %v967 = vpack.c.b16 %v877, %v868
        %v968 = vpack.c.b16 %v878, %v869
        %v969 = vpack.c.b16 %v879, %v870
        %v970 = vpack.c.b16 %v880, %v871
        %v971 = vpack.c.b16 %v881, %v872
        %v972 = vpack.c.b16 %v882, %v873
        %v973 = vpack.c.b16 %v892, %v883
        %v974 = vpack.c.b16 %v893, %v884
        %v975 = vpack.c.b16 %v894, %v885
        %v976 = vpack.c.b16 %v895, %v886
        %v977 = vpack.c.b16 %v896, %v887
        %v978 = vpack.c.b16 %v897, %v888
        %v979 = vpack.c.b16 %v898, %v889
        %v980 = vpack.c.b16 %v899, %v890
        %v981 = vpack.c.b16 %v900, %v891
        %v982 = vpack.c.b16 %v910, %v901
        %v983 = vpack.c.b16 %v911, %v902
        %v984 = vpack.c.b16 %v912, %v903
        %v985 = vpack.c.b16 %v913, %v904
        %v986 = vpack.c.b16 %v914, %v905
        %v987 = vpack.c.b16 %v915, %v906
        %v988 = vpack.c.b16 %v916, %v907
        %v989 = vpack.c.b16 %v917, %v908
        %v990 = vpack.c.b16 %v918, %v909
        %1063 = vmatprep.subr.bf16.mxu0 %v983
        %1064 = vmatpush1.bf16.msra.mxu0 %v982
        %1065 = vmatprep.subr.bf16.mxu0 %v974
        %1066 = vmatpush1.bf16.msra.mxu0 %v973
        %1067 = vmatprep.subr.bf16.mxu0 %v965
        %1068 = vmatpush1.bf16.msra.mxu0 %v964
        %1069 = vmatprep.subr.bf16.mxu0 %v956
        %1070 = vmatpush1.bf16.msra.mxu0 %v955
        %1071 = vmatprep.subr.bf16.mxu0 %v947
        %1072 = vmatpush1.bf16.msra.mxu0 %v946
        %1073 = vmatprep.subr.bf16.mxu0 %v938
        %1074 = vmatpush1.bf16.msra.mxu0 %v937
        %1075 = vmatprep.subr.bf16.mxu0 %v929
        %1076 = vmatpush1.bf16.msra.mxu0 %v928
        %1077 = vmatprep.subr.bf16.mxu0 %v920
        %1078 = vmatpush1.bf16.msra.mxu0 %v919
        %1079 = vmatprep.subr.bf16.mxu0 0
        %1080 = vmatpush2.bf16.msra.mxu0 0
        %1081 = vmatprep.subr.bf16.mxu0 0
        %1082 = vmatpush2.bf16.msra.mxu0 0
        %1083 = vmatprep.subr.bf16.mxu0 0
        %1084 = vmatpush2.bf16.msra.mxu0 0
        %1085 = vmatprep.subr.bf16.mxu0 0
        %1086 = vmatpush2.bf16.msra.mxu0 0
        %1087 = vmatprep.subr.bf16.mxu0 0
        %1088 = vmatpush2.bf16.msra.mxu0 0
        %1089 = vmatprep.subr.bf16.mxu0 0
        %1090 = vmatpush2.bf16.msra.mxu0 0
        %1091 = vmatprep.subr.bf16.mxu0 0
        %1092 = vmatpush2.bf16.msra.mxu0 0
        %1093 = vmatprep.subr.bf16.mxu0 0
        %1094 = vmatpush2.bf16.msra.mxu0 0
        %1095 = vmatprep.mubr.bf16.mxu0 0
        %1096 = vmatmul.mubr.bf16.gmra.mxu0 %v607
        %v1097 = vpop.f32.mrf.mxu0
        %v1098 = vadd.f32 0.0, %v1097
        %v1099 = vpop.f32.mrf.mxu0
        %v1100 = vadd.f32 0.0, %v1099
        %v1101 = vpop.f32.mrf.mxu0
        %v1102 = vadd.f32 0.0, %v1101
        %v1103 = vpop.f32.mrf.mxu0
        %v1104 = vadd.f32 0.0, %v1103
        %1105 = vmatprep.mubr.bf16.mxu0 0
        %1106 = vmatmul.mubr.bf16.gmra.mxu0 %v608
        %v1107 = vpop.f32.mrf.mxu0
        %v1108 = vadd.f32 0.0, %v1107
        %v1109 = vpop.f32.mrf.mxu0
        %v1110 = vadd.f32 0.0, %v1109
        %v1111 = vpop.f32.mrf.mxu0
        %v1112 = vadd.f32 0.0, %v1111
        %v1113 = vpop.f32.mrf.mxu0
        %v1114 = vadd.f32 0.0, %v1113
        %1115 = vmatprep.mubr.bf16.mxu0 0
        %1116 = vmatmul.mubr.bf16.gmra.mxu0 %v609
        %v1117 = vpop.f32.mrf.mxu0
        %v1118 = vadd.f32 0.0, %v1117
        %v1119 = vpop.f32.mrf.mxu0
        %v1120 = vadd.f32 0.0, %v1119
        %v1121 = vpop.f32.mrf.mxu0
        %v1122 = vadd.f32 0.0, %v1121
        %v1123 = vpop.f32.mrf.mxu0
        %v1124 = vadd.f32 0.0, %v1123
        %1125 = vmatprep.mubr.bf16.mxu0 0
        %1126 = vmatmul.mubr.bf16.gmra.mxu0 %v610
        %v1127 = vpop.f32.mrf.mxu0
        %v1128 = vadd.f32 0.0, %v1127
        %v1129 = vpop.f32.mrf.mxu0
        %v1130 = vadd.f32 0.0, %v1129
        %v1131 = vpop.f32.mrf.mxu0
        %v1132 = vadd.f32 0.0, %v1131
        %v1133 = vpop.f32.mrf.mxu0
        %v1134 = vadd.f32 0.0, %v1133
        %1135 = vmatprep.mubr.bf16.mxu0 0
        %1136 = vmatmul.mubr.bf16.gmra.mxu0 %v611
        %v1137 = vpop.f32.mrf.mxu0
        %v1138 = vadd.f32 0.0, %v1137
        %v1139 = vpop.f32.mrf.mxu0
        %v1140 = vadd.f32 0.0, %v1139
        %v1141 = vpop.f32.mrf.mxu0
        %v1142 = vadd.f32 0.0, %v1141
        %v1143 = vpop.f32.mrf.mxu0
        %v1144 = vadd.f32 0.0, %v1143
        %1145 = vmatprep.mubr.bf16.mxu0 0
        %1146 = vmatmul.mubr.bf16.gmra.mxu0 %v612
        %v1147 = vpop.f32.mrf.mxu0
        %v1148 = vadd.f32 0.0, %v1147
        %v1149 = vpop.f32.mrf.mxu0
        %v1150 = vadd.f32 0.0, %v1149
        %v1151 = vpop.f32.mrf.mxu0
        %v1152 = vadd.f32 0.0, %v1151
        %v1153 = vpop.f32.mrf.mxu0
        %v1154 = vadd.f32 0.0, %v1153
        %1155 = vmatprep.mubr.bf16.mxu0 0
        %1156 = vmatmul.mubr.bf16.gmra.mxu0 %v613
        %v1157 = vpop.f32.mrf.mxu0
        %v1158 = vpop.f32.mrf.mxu0
        %v1159 = vpop.f32.mrf.mxu0
        %v1160 = vpop.f32.mrf.mxu0
        %1161 = vmatprep.mubr.bf16.mxu0 0
        %1162 = vmatmul.mubr.bf16.gmra.mxu0 %v614
        %v1163 = vpop.f32.mrf.mxu0
        %v1164 = vpop.f32.mrf.mxu0
        %v1165 = vpop.f32.mrf.mxu0
        %v1166 = vpop.f32.mrf.mxu0
        %1167 = vdwg.mxu0
        %1168 = vmatprep.subr.bf16.mxu0 %v985
        %1169 = vmatpush1.bf16.msra.mxu0 %v984
        %1170 = vmatprep.subr.bf16.mxu0 %v976
        %1171 = vmatpush1.bf16.msra.mxu0 %v975
        %1172 = vmatprep.subr.bf16.mxu0 %v967
        %1173 = vmatpush1.bf16.msra.mxu0 %v966
        %1174 = vmatprep.subr.bf16.mxu0 %v958
        %1175 = vmatpush1.bf16.msra.mxu0 %v957
        %1176 = vmatprep.subr.bf16.mxu0 %v949
        %1177 = vmatpush1.bf16.msra.mxu0 %v948
        %1178 = vmatprep.subr.bf16.mxu0 %v940
        %1179 = vmatpush1.bf16.msra.mxu0 %v939
        %1180 = vmatprep.subr.bf16.mxu0 %v931
        %1181 = vmatpush1.bf16.msra.mxu0 %v930
        %1182 = vmatprep.subr.bf16.mxu0 %v922
        %1183 = vmatpush1.bf16.msra.mxu0 %v921
        %1184 = vmatprep.subr.bf16.mxu0 0
        %1185 = vmatpush2.bf16.msra.mxu0 0
        %1186 = vmatprep.subr.bf16.mxu0 0
        %1187 = vmatpush2.bf16.msra.mxu0 0
        %1188 = vmatprep.subr.bf16.mxu0 0
        %1189 = vmatpush2.bf16.msra.mxu0 0
        %1190 = vmatprep.subr.bf16.mxu0 0
        %1191 = vmatpush2.bf16.msra.mxu0 0
        %1192 = vmatprep.subr.bf16.mxu0 0
        %1193 = vmatpush2.bf16.msra.mxu0 0
        %1194 = vmatprep.subr.bf16.mxu0 0
        %1195 = vmatpush2.bf16.msra.mxu0 0
        %1196 = vmatprep.subr.bf16.mxu0 0
        %1197 = vmatpush2.bf16.msra.mxu0 0
        %1198 = vmatprep.subr.bf16.mxu0 0
        %1199 = vmatpush2.bf16.msra.mxu0 0
        %1200 = vmatprep.mubr.bf16.mxu0 0
        %1201 = vmatmul.mubr.bf16.gmra.mxu0 %v607
        %v1202 = vpop.f32.mrf.mxu0
        %v1203 = vadd.f32 0.0, %v1202
        %v1204 = vpop.f32.mrf.mxu0
        %v1205 = vadd.f32 0.0, %v1204
        %v1206 = vpop.f32.mrf.mxu0
        %v1207 = vadd.f32 0.0, %v1206
        %v1208 = vpop.f32.mrf.mxu0
        %v1209 = vadd.f32 0.0, %v1208
        %1210 = vmatprep.mubr.bf16.mxu0 0
        %1211 = vmatmul.mubr.bf16.gmra.mxu0 %v608
        %v1212 = vpop.f32.mrf.mxu0
        %v1213 = vadd.f32 0.0, %v1212
        %v1214 = vpop.f32.mrf.mxu0
        %v1215 = vadd.f32 0.0, %v1214
        %v1216 = vpop.f32.mrf.mxu0
        %v1217 = vadd.f32 0.0, %v1216
        %v1218 = vpop.f32.mrf.mxu0
        %v1219 = vadd.f32 0.0, %v1218
        %1220 = vmatprep.mubr.bf16.mxu0 0
        %1221 = vmatmul.mubr.bf16.gmra.mxu0 %v609
        %v1222 = vpop.f32.mrf.mxu0
        %v1223 = vadd.f32 0.0, %v1222
        %v1224 = vpop.f32.mrf.mxu0
        %v1225 = vadd.f32 0.0, %v1224
        %v1226 = vpop.f32.mrf.mxu0
        %v1227 = vadd.f32 0.0, %v1226
        %v1228 = vpop.f32.mrf.mxu0
        %v1229 = vadd.f32 0.0, %v1228
        %1230 = vmatprep.mubr.bf16.mxu0 0
        %1231 = vmatmul.mubr.bf16.gmra.mxu0 %v610
        %v1232 = vpop.f32.mrf.mxu0
        %v1233 = vadd.f32 0.0, %v1232
        %v1234 = vpop.f32.mrf.mxu0
        %v1235 = vadd.f32 0.0, %v1234
        %v1236 = vpop.f32.mrf.mxu0
        %v1237 = vadd.f32 0.0, %v1236
        %v1238 = vpop.f32.mrf.mxu0
        %v1239 = vadd.f32 0.0, %v1238
        %1240 = vmatprep.mubr.bf16.mxu0 0
        %1241 = vmatmul.mubr.bf16.gmra.mxu0 %v611
        %v1242 = vpop.f32.mrf.mxu0
        %v1243 = vadd.f32 0.0, %v1242
        %v1244 = vpop.f32.mrf.mxu0
        %v1245 = vadd.f32 0.0, %v1244
        %v1246 = vpop.f32.mrf.mxu0
        %v1247 = vadd.f32 0.0, %v1246
        %v1248 = vpop.f32.mrf.mxu0
        %v1249 = vadd.f32 0.0, %v1248
        %1250 = vmatprep.mubr.bf16.mxu0 0
        %1251 = vmatmul.mubr.bf16.gmra.mxu0 %v612
        %v1252 = vpop.f32.mrf.mxu0
        %v1253 = vadd.f32 0.0, %v1252
        %v1254 = vpop.f32.mrf.mxu0
        %v1255 = vadd.f32 0.0, %v1254
        %v1256 = vpop.f32.mrf.mxu0
        %v1257 = vadd.f32 0.0, %v1256
        %v1258 = vpop.f32.mrf.mxu0
        %v1259 = vadd.f32 0.0, %v1258
        %1260 = vmatprep.mubr.bf16.mxu0 0
        %1261 = vmatmul.mubr.bf16.gmra.mxu0 %v613
        %v1262 = vpop.f32.mrf.mxu0
        %v1263 = vpop.f32.mrf.mxu0
        %v1264 = vadd.f32 0.0, %v1263
        %v1265 = vpop.f32.mrf.mxu0
        %v1266 = vpop.f32.mrf.mxu0
        %v1267 = vadd.f32 0.0, %v1266
        %1268 = vmatprep.mubr.bf16.mxu0 0
        %1269 = vmatmul.mubr.bf16.gmra.mxu0 %v614
        %v1270 = vpop.f32.mrf.mxu0
        %v1271 = vpop.f32.mrf.mxu0
        %v1272 = vadd.f32 0.0, %v1271
        %v1273 = vpop.f32.mrf.mxu0
        %v1274 = vpop.f32.mrf.mxu0
        %v1275 = vadd.f32 0.0, %v1274
        %1276 = vdwg.mxu0
        %1277 = vmatprep.subr.bf16.mxu0 %v987
        %1278 = vmatpush1.bf16.msra.mxu0 %v986
        %1279 = vmatprep.subr.bf16.mxu0 %v978
        %1280 = vmatpush1.bf16.msra.mxu0 %v977
        %1281 = vmatprep.subr.bf16.mxu0 %v969
        %1282 = vmatpush1.bf16.msra.mxu0 %v968
        %1283 = vmatprep.subr.bf16.mxu0 %v960
        %1284 = vmatpush1.bf16.msra.mxu0 %v959
        %1285 = vmatprep.subr.bf16.mxu0 %v951
        %1286 = vmatpush1.bf16.msra.mxu0 %v950
        %1287 = vmatprep.subr.bf16.mxu0 %v942
        %1288 = vmatpush1.bf16.msra.mxu0 %v941
        %1289 = vmatprep.subr.bf16.mxu0 %v933
        %1290 = vmatpush1.bf16.msra.mxu0 %v932
        %1291 = vmatprep.subr.bf16.mxu0 %v924
        %1292 = vmatpush1.bf16.msra.mxu0 %v923
        %1293 = vmatprep.subr.bf16.mxu0 0
        %1294 = vmatpush2.bf16.msra.mxu0 0
        %1295 = vmatprep.subr.bf16.mxu0 0
        %1296 = vmatpush2.bf16.msra.mxu0 0
        %1297 = vmatprep.subr.bf16.mxu0 0
        %1298 = vmatpush2.bf16.msra.mxu0 0
        %1299 = vmatprep.subr.bf16.mxu0 0
        %1300 = vmatpush2.bf16.msra.mxu0 0
        %1301 = vmatprep.subr.bf16.mxu0 0
        %1302 = vmatpush2.bf16.msra.mxu0 0
        %1303 = vmatprep.subr.bf16.mxu0 0
        %1304 = vmatpush2.bf16.msra.mxu0 0
        %1305 = vmatprep.subr.bf16.mxu0 0
        %1306 = vmatpush2.bf16.msra.mxu0 0
        %1307 = vmatprep.subr.bf16.mxu0 0
        %1308 = vmatpush2.bf16.msra.mxu0 0
        %1309 = vmatprep.mubr.bf16.mxu0 0
        %1310 = vmatmul.mubr.bf16.gmra.mxu0 %v607
        %v1311 = vpop.f32.mrf.mxu0
        %v1312 = vadd.f32 0.0, %v1311
        %v1313 = vpop.f32.mrf.mxu0
        %v1314 = vadd.f32 0.0, %v1313
        %v1315 = vpop.f32.mrf.mxu0
        %v1316 = vadd.f32 0.0, %v1315
        %v1317 = vpop.f32.mrf.mxu0
        %v1318 = vadd.f32 0.0, %v1317
        %1319 = vmatprep.mubr.bf16.mxu0 0
        %1320 = vmatmul.mubr.bf16.gmra.mxu0 %v608
        %v1321 = vpop.f32.mrf.mxu0
        %v1322 = vadd.f32 0.0, %v1321
        %v1323 = vpop.f32.mrf.mxu0
        %v1324 = vadd.f32 0.0, %v1323
        %v1325 = vpop.f32.mrf.mxu0
        %v1326 = vadd.f32 0.0, %v1325
        %v1327 = vpop.f32.mrf.mxu0
        %v1328 = vadd.f32 0.0, %v1327
        %1329 = vmatprep.mubr.bf16.mxu0 0
        %1330 = vmatmul.mubr.bf16.gmra.mxu0 %v609
        %v1331 = vpop.f32.mrf.mxu0
        %v1332 = vadd.f32 0.0, %v1331
        %v1333 = vpop.f32.mrf.mxu0
        %v1334 = vadd.f32 0.0, %v1333
        %v1335 = vpop.f32.mrf.mxu0
        %v1336 = vadd.f32 0.0, %v1335
        %v1337 = vpop.f32.mrf.mxu0
        %v1338 = vadd.f32 0.0, %v1337
        %1339 = vmatprep.mubr.bf16.mxu0 0
        %1340 = vmatmul.mubr.bf16.gmra.mxu0 %v610
        %v1341 = vpop.f32.mrf.mxu0
        %v1342 = vadd.f32 0.0, %v1341
        %v1343 = vpop.f32.mrf.mxu0
        %v1344 = vadd.f32 0.0, %v1343
        %v1345 = vpop.f32.mrf.mxu0
        %v1346 = vadd.f32 0.0, %v1345
        %v1347 = vpop.f32.mrf.mxu0
        %v1348 = vadd.f32 0.0, %v1347
        %1349 = vmatprep.mubr.bf16.mxu0 0
        %1350 = vmatmul.mubr.bf16.gmra.mxu0 %v611
        %v1351 = vpop.f32.mrf.mxu0
        %v1352 = vadd.f32 0.0, %v1351
        %v1353 = vpop.f32.mrf.mxu0
        %v1354 = vadd.f32 0.0, %v1353
        %v1355 = vpop.f32.mrf.mxu0
        %v1356 = vadd.f32 0.0, %v1355
        %v1357 = vpop.f32.mrf.mxu0
        %v1358 = vadd.f32 0.0, %v1357
        %1359 = vmatprep.mubr.bf16.mxu0 0
        %1360 = vmatmul.mubr.bf16.gmra.mxu0 %v612
        %v1361 = vpop.f32.mrf.mxu0
        %v1362 = vadd.f32 0.0, %v1361
        %v1363 = vpop.f32.mrf.mxu0
        %v1364 = vadd.f32 0.0, %v1363
        %v1365 = vpop.f32.mrf.mxu0
        %v1366 = vadd.f32 0.0, %v1365
        %v1367 = vpop.f32.mrf.mxu0
        %v1368 = vadd.f32 0.0, %v1367
        %1369 = vmatprep.mubr.bf16.mxu0 0
        %1370 = vmatmul.mubr.bf16.gmra.mxu0 %v613
        %v1371 = vpop.f32.mrf.mxu0
        %v1372 = vadd.f32 0.0, %v1371
        %v1373 = vpop.f32.mrf.mxu0
        %v1374 = vadd.f32 0.0, %v1373
        %v1375 = vpop.f32.mrf.mxu0
        %v1376 = vadd.f32 0.0, %v1375
        %v1377 = vpop.f32.mrf.mxu0
        %v1378 = vadd.f32 0.0, %v1377
        %1379 = vmatprep.mubr.bf16.mxu0 0
        %1380 = vmatmul.mubr.bf16.gmra.mxu0 %v614
        %v1381 = vpop.f32.mrf.mxu0
        %v1382 = vadd.f32 0.0, %v1381
        %v1383 = vpop.f32.mrf.mxu0
        %v1384 = vadd.f32 0.0, %v1383
        %v1385 = vpop.f32.mrf.mxu0
        %v1386 = vadd.f32 0.0, %v1385
        %v1387 = vpop.f32.mrf.mxu0
        %v1388 = vadd.f32 0.0, %v1387
        %1389 = vdwg.mxu0
        %1390 = vmatprep.subr.bf16.mxu0 %v989
        %1391 = vmatpush1.bf16.msra.mxu0 %v988
        %1392 = vmatprep.subr.bf16.mxu0 %v980
        %1393 = vmatpush1.bf16.msra.mxu0 %v979
        %1394 = vmatprep.subr.bf16.mxu0 %v971
        %1395 = vmatpush1.bf16.msra.mxu0 %v970
        %1396 = vmatprep.subr.bf16.mxu0 %v962
        %1397 = vmatpush1.bf16.msra.mxu0 %v961
        %1398 = vmatprep.subr.bf16.mxu0 %v953
        %1399 = vmatpush1.bf16.msra.mxu0 %v952
        %1400 = vmatprep.subr.bf16.mxu0 %v944
        %1401 = vmatpush1.bf16.msra.mxu0 %v943
        %1402 = vmatprep.subr.bf16.mxu0 %v935
        %1403 = vmatpush1.bf16.msra.mxu0 %v934
        %1404 = vmatprep.subr.bf16.mxu0 %v926
        %1405 = vmatpush1.bf16.msra.mxu0 %v925
        %1406 = vmatprep.subr.bf16.mxu0 0
        %1407 = vmatpush2.bf16.msra.mxu0 0
        %1408 = vmatprep.subr.bf16.mxu0 0
        %1409 = vmatpush2.bf16.msra.mxu0 0
        %1410 = vmatprep.subr.bf16.mxu0 0
        %1411 = vmatpush2.bf16.msra.mxu0 0
        %1412 = vmatprep.subr.bf16.mxu0 0
        %1413 = vmatpush2.bf16.msra.mxu0 0
        %1414 = vmatprep.subr.bf16.mxu0 0
        %1415 = vmatpush2.bf16.msra.mxu0 0
        %1416 = vmatprep.subr.bf16.mxu0 0
        %1417 = vmatpush2.bf16.msra.mxu0 0
        %1418 = vmatprep.subr.bf16.mxu0 0
        %1419 = vmatpush2.bf16.msra.mxu0 0
        %1420 = vmatprep.subr.bf16.mxu0 0
        %1421 = vmatpush2.bf16.msra.mxu0 0
        %1422 = vmatprep.mubr.bf16.mxu0 0
        %1423 = vmatmul.mubr.bf16.gmra.mxu0 %v607
        %v1424 = vpop.f32.mrf.mxu0
        %v1425 = vpop.f32.mrf.mxu0
        %v1426 = vpop.f32.mrf.mxu0
        %v1427 = vpop.f32.mrf.mxu0
        %1428 = vmatprep.mubr.bf16.mxu0 0
        %1429 = vmatmul.mubr.bf16.gmra.mxu0 %v608
        %v1430 = vpop.f32.mrf.mxu0
        %v1431 = vpop.f32.mrf.mxu0
        %v1432 = vpop.f32.mrf.mxu0
        %v1433 = vpop.f32.mrf.mxu0
        %1434 = vmatprep.mubr.bf16.mxu0 0
        %1435 = vmatmul.mubr.bf16.gmra.mxu0 %v609
        %v1436 = vpop.f32.mrf.mxu0
        %v1437 = vadd.f32 0.0, %v1436
        %v1438 = vpop.f32.mrf.mxu0
        %v1439 = vadd.f32 0.0, %v1438
        %v1440 = vpop.f32.mrf.mxu0
        %v1441 = vadd.f32 0.0, %v1440
        %v1442 = vpop.f32.mrf.mxu0
        %v1443 = vadd.f32 0.0, %v1442
        %1444 = vmatprep.mubr.bf16.mxu0 0
        %1445 = vmatmul.mubr.bf16.gmra.mxu0 %v610
        %v1446 = vpop.f32.mrf.mxu0
        %v1447 = vadd.f32 0.0, %v1446
        %v1448 = vpop.f32.mrf.mxu0
        %v1449 = vadd.f32 0.0, %v1448
        %v1450 = vpop.f32.mrf.mxu0
        %v1451 = vadd.f32 0.0, %v1450
        %v1452 = vpop.f32.mrf.mxu0
        %v1453 = vadd.f32 0.0, %v1452
        %1454 = vmatprep.mubr.bf16.mxu0 0
        %1455 = vmatmul.mubr.bf16.gmra.mxu0 %v611
        %v1456 = vpop.f32.mrf.mxu0
        %v1457 = vadd.f32 0.0, %v1456
        %v1458 = vpop.f32.mrf.mxu0
        %v1459 = vadd.f32 0.0, %v1458
        %v1460 = vpop.f32.mrf.mxu0
        %v1461 = vadd.f32 0.0, %v1460
        %v1462 = vpop.f32.mrf.mxu0
        %v1463 = vadd.f32 0.0, %v1462
        %1464 = vmatprep.mubr.bf16.mxu0 0
        %1465 = vmatmul.mubr.bf16.gmra.mxu0 %v612
        %v1466 = vpop.f32.mrf.mxu0
        %v1467 = vadd.f32 0.0, %v1466
        %v1468 = vpop.f32.mrf.mxu0
        %v1469 = vadd.f32 0.0, %v1468
        %v1470 = vpop.f32.mrf.mxu0
        %v1471 = vadd.f32 0.0, %v1470
        %v1472 = vpop.f32.mrf.mxu0
        %v1473 = vadd.f32 0.0, %v1472
        %1474 = vmatprep.mubr.bf16.mxu0 0
        %1475 = vmatmul.mubr.bf16.gmra.mxu0 %v613
        %v1476 = vpop.f32.mrf.mxu0
        %v1477 = vadd.f32 0.0, %v1476
        %v1478 = vpop.f32.mrf.mxu0
        %v1479 = vadd.f32 0.0, %v1478
        %v1480 = vpop.f32.mrf.mxu0
        %v1481 = vadd.f32 0.0, %v1480
        %v1482 = vpop.f32.mrf.mxu0
        %v1483 = vadd.f32 0.0, %v1482
        %1484 = vmatprep.mubr.bf16.mxu0 0
        %1485 = vmatmul.mubr.bf16.gmra.mxu0 %v614
        %v1486 = vpop.f32.mrf.mxu0
        %v1487 = vadd.f32 0.0, %v1486
        %v1488 = vpop.f32.mrf.mxu0
        %v1489 = vadd.f32 0.0, %v1488
        %v1490 = vpop.f32.mrf.mxu0
        %v1491 = vadd.f32 0.0, %v1490
        %v1492 = vpop.f32.mrf.mxu0
        %v1493 = vadd.f32 0.0, %v1492
        %1494 = vdwg.mxu0
        %1495 = vmatprep.subr.bf16.mxu0 0
        %1496 = vmatpush1.bf16.msra.mxu0 %v990
        %1497 = vmatprep.subr.bf16.mxu0 0
        %1498 = vmatpush1.bf16.msra.mxu0 %v981
        %1499 = vmatprep.subr.bf16.mxu0 0
        %1500 = vmatpush1.bf16.msra.mxu0 %v972
        %1501 = vmatprep.subr.bf16.mxu0 0
        %1502 = vmatpush1.bf16.msra.mxu0 %v963
        %1503 = vmatprep.subr.bf16.mxu0 0
        %1504 = vmatpush1.bf16.msra.mxu0 %v954
        %1505 = vmatprep.subr.bf16.mxu0 0
        %1506 = vmatpush1.bf16.msra.mxu0 %v945
        %1507 = vmatprep.subr.bf16.mxu0 0
        %1508 = vmatpush1.bf16.msra.mxu0 %v936
        %1509 = vmatprep.subr.bf16.mxu0 0
        %1510 = vmatpush1.bf16.msra.mxu0 %v927
        %1511 = vmatprep.subr.bf16.mxu0 0
        %1512 = vmatpush2.bf16.msra.mxu0 0
        %1513 = vmatprep.subr.bf16.mxu0 0
        %1514 = vmatpush2.bf16.msra.mxu0 0
        %1515 = vmatprep.subr.bf16.mxu0 0
        %1516 = vmatpush2.bf16.msra.mxu0 0
        %1517 = vmatprep.subr.bf16.mxu0 0
        %1518 = vmatpush2.bf16.msra.mxu0 0
        %1519 = vmatprep.subr.bf16.mxu0 0
        %1520 = vmatpush2.bf16.msra.mxu0 0
        %1521 = vmatprep.subr.bf16.mxu0 0
        %1522 = vmatpush2.bf16.msra.mxu0 0
        %1523 = vmatprep.subr.bf16.mxu0 0
        %1524 = vmatpush2.bf16.msra.mxu0 0
        %1525 = vmatprep.subr.bf16.mxu0 0
        %1526 = vmatpush2.bf16.msra.mxu0 0
        %1527 = vmatprep.mubr.bf16.mxu0 0
        %1528 = vmatmul.mubr.bf16.gmra.mxu0 %v607
        %v1529 = vpop.f32.mrf.mxu0
        %v1530 = vpop.f32.mrf.mxu0
        %v1531 = vpop.f32.mrf.mxu0
        %v1532 = vpop.f32.mrf.mxu0
        %1533 = vmatprep.mubr.bf16.mxu0 0
        %1534 = vmatmul.mubr.bf16.gmra.mxu0 %v608
        %v1535 = vpop.f32.mrf.mxu0
        %v1536 = vpop.f32.mrf.mxu0
        %v1537 = vpop.f32.mrf.mxu0
        %v1538 = vpop.f32.mrf.mxu0
        %1539 = vmatprep.mubr.bf16.mxu0 0
        %1540 = vmatmul.mubr.bf16.gmra.mxu0 %v609
        %v1541 = vpop.f32.mrf.mxu0
        %v1542 = vadd.f32 0.0, %v1541
        %v1543 = vpop.f32.mrf.mxu0
        %v1544 = vpop.f32.mrf.mxu0
        %v1545 = vadd.f32 0.0, %v1544
        %v1546 = vpop.f32.mrf.mxu0
        %1547 = vmatprep.mubr.bf16.mxu0 0
        %1548 = vmatmul.mubr.bf16.gmra.mxu0 %v610
        %v1549 = vpop.f32.mrf.mxu0
        %v1550 = vadd.f32 0.0, %v1549
        %v1551 = vpop.f32.mrf.mxu0
        %v1552 = vpop.f32.mrf.mxu0
        %v1553 = vadd.f32 0.0, %v1552
        %v1554 = vpop.f32.mrf.mxu0
        %1555 = vmatprep.mubr.bf16.mxu0 0
        %1556 = vmatmul.mubr.bf16.gmra.mxu0 %v611
        %v1557 = vpop.f32.mrf.mxu0
        %v1558 = vadd.f32 0.0, %v1557
        %v1559 = vpop.f32.mrf.mxu0
        %v1560 = vpop.f32.mrf.mxu0
        %v1561 = vadd.f32 0.0, %v1560
        %v1562 = vpop.f32.mrf.mxu0
        %1563 = vmatprep.mubr.bf16.mxu0 0
        %1564 = vmatmul.mubr.bf16.gmra.mxu0 %v612
        %v1565 = vpop.f32.mrf.mxu0
        %v1566 = vadd.f32 0.0, %v1565
        %v1567 = vpop.f32.mrf.mxu0
        %v1568 = vpop.f32.mrf.mxu0
        %v1569 = vadd.f32 0.0, %v1568
        %v1570 = vpop.f32.mrf.mxu0
        %1571 = vmatprep.mubr.bf16.mxu0 0
        %1572 = vmatmul.mubr.bf16.gmra.mxu0 %v613
        %v1573 = vpop.f32.mrf.mxu0
        %v1574 = vadd.f32 0.0, %v1573
        %v1575 = vpop.f32.mrf.mxu0
        %v1576 = vpop.f32.mrf.mxu0
        %v1577 = vadd.f32 0.0, %v1576
        %v1578 = vpop.f32.mrf.mxu0
        %1579 = vmatprep.mubr.bf16.mxu0 0
        %1580 = vmatmul.mubr.bf16.gmra.mxu0 %v614
        %v1581 = vpop.f32.mrf.mxu0
        %v1582 = vadd.f32 0.0, %v1581
        %v1583 = vpop.f32.mrf.mxu0
        %v1584 = vpop.f32.mrf.mxu0
        %v1585 = vadd.f32 0.0, %v1584
        %v1586 = vpop.f32.mrf.mxu0
        %1587 = vdwg.mxu0
        %vm1601 = vcmask 1041408
        %v1602 = vrot.slane 0.0, 6
        %v1603 = vsel %vm1601, %v1602, %v1602
        %v1604 = vrot.slane %v1098, 6
        %v1605 = vrot.slane %v1102, 6
        %v1606 = vsel %vm1601, %v1604, %v1605
        %v1607 = vrot.slane %v1108, 6
        %v1608 = vrot.slane %v1112, 6
        %v1609 = vsel %vm1601, %v1607, %v1608
        %v1610 = vrot.slane %v1118, 6
        %v1611 = vrot.slane %v1122, 6
        %v1612 = vsel %vm1601, %v1610, %v1611
        %v1613 = vrot.slane %v1128, 6
        %v1614 = vrot.slane %v1132, 6
        %v1615 = vsel %vm1601, %v1613, %v1614
        %v1616 = vrot.slane %v1138, 6
        %v1617 = vrot.slane %v1142, 6
        %v1618 = vsel %vm1601, %v1616, %v1617
        %v1619 = vrot.slane %v1148, 6
        %v1620 = vrot.slane %v1152, 6
        %v1621 = vsel %vm1601, %v1619, %v1620
        %v1636 = vsel %vm1601, 0.0, %v1602
        %v1637 = vsel %vm1601, 0.0, %v1604
        %v1638 = vsel %vm1601, 0.0, %v1607
        %v1639 = vsel %vm1601, 0.0, %v1610
        %v1640 = vsel %vm1601, 0.0, %v1613
        %v1641 = vsel %vm1601, 0.0, %v1616
        %v1642 = vsel %vm1601, 0.0, %v1619
        %v1643 = vadd.f32 %v1636, 0.0
        %v1644 = vadd.f32 %v1603, 0.0
        %v1645 = vadd.f32 %v1637, %v1100
        %v1646 = vadd.f32 %v1606, %v1104
        %v1647 = vadd.f32 %v1638, %v1110
        %v1648 = vadd.f32 %v1609, %v1114
        %v1649 = vadd.f32 %v1639, %v1120
        %v1650 = vadd.f32 %v1612, %v1124
        %v1651 = vadd.f32 %v1640, %v1130
        %v1652 = vadd.f32 %v1615, %v1134
        %v1653 = vadd.f32 %v1641, %v1140
        %v1654 = vadd.f32 %v1618, %v1144
        %v1655 = vadd.f32 %v1642, %v1150
        %v1656 = vadd.f32 %v1621, %v1154
        %vm1669 = vcmask 1045504
        %v1670 = vrot.slane 0.0, 2
        %v1671 = vsel %vm1669, %v1670, %v1670
        %v1672 = vrot.slane %v1203, 2
        %v1673 = vrot.slane %v1207, 2
        %v1674 = vsel %vm1669, %v1672, %v1673
        %v1675 = vrot.slane %v1213, 2
        %v1676 = vrot.slane %v1217, 2
        %v1677 = vsel %vm1669, %v1675, %v1676
        %v1678 = vrot.slane %v1223, 2
        %v1679 = vrot.slane %v1227, 2
        %v1680 = vsel %vm1669, %v1678, %v1679
        %v1681 = vrot.slane %v1233, 2
        %v1682 = vrot.slane %v1237, 2
        %v1683 = vsel %vm1669, %v1681, %v1682
        %v1684 = vrot.slane %v1243, 2
        %v1685 = vrot.slane %v1247, 2
        %v1686 = vsel %vm1669, %v1684, %v1685
        %v1687 = vrot.slane %v1253, 2
        %v1688 = vrot.slane %v1257, 2
        %v1689 = vsel %vm1669, %v1687, %v1688
        %v1704 = vsel %vm1669, %v1670, 0.0
        %v1705 = vsel %vm1669, %v1673, 0.0
        %v1706 = vsel %vm1669, %v1676, 0.0
        %v1707 = vsel %vm1669, %v1679, 0.0
        %v1708 = vsel %vm1669, %v1682, 0.0
        %v1709 = vsel %vm1669, %v1685, 0.0
        %v1710 = vsel %vm1669, %v1688, 0.0
        %v1711 = vadd.f32 %v1643, %v1671
        %v1712 = vadd.f32 %v1644, %v1704
        %v1713 = vadd.f32 %v1645, %v1674
        %v1714 = vadd.f32 %v1646, %v1705
        %v1715 = vadd.f32 %v1647, %v1677
        %v1716 = vadd.f32 %v1648, %v1706
        %v1717 = vadd.f32 %v1649, %v1680
        %v1718 = vadd.f32 %v1650, %v1707
        %v1719 = vadd.f32 %v1651, %v1683
        %v1720 = vadd.f32 %v1652, %v1708
        %v1721 = vadd.f32 %v1653, %v1686
        %v1722 = vadd.f32 %v1654, %v1709
        %v1723 = vadd.f32 %v1655, %v1689
        %v1724 = vadd.f32 %v1656, %v1710
        %v1741 = vrot.slane %v1205, 6
        %v1742 = vrot.slane %v1209, 6
        %v1743 = vsel %vm1601, %v1741, %v1742
        %v1744 = vrot.slane %v1215, 6
        %v1745 = vrot.slane %v1219, 6
        %v1746 = vsel %vm1601, %v1744, %v1745
        %v1747 = vrot.slane %v1225, 6
        %v1748 = vrot.slane %v1229, 6
        %v1749 = vsel %vm1601, %v1747, %v1748
        %v1750 = vrot.slane %v1235, 6
        %v1751 = vrot.slane %v1239, 6
        %v1752 = vsel %vm1601, %v1750, %v1751
        %v1753 = vrot.slane %v1245, 6
        %v1754 = vrot.slane %v1249, 6
        %v1755 = vsel %vm1601, %v1753, %v1754
        %v1756 = vrot.slane %v1255, 6
        %v1757 = vrot.slane %v1259, 6
        %v1758 = vsel %vm1601, %v1756, %v1757
        %v1759 = vrot.slane %v1264, 6
        %v1760 = vrot.slane %v1267, 6
        %v1761 = vsel %vm1601, %v1759, %v1760
        %v1762 = vrot.slane %v1272, 6
        %v1763 = vrot.slane %v1275, 6
        %v1764 = vsel %vm1601, %v1762, %v1763
        %v1781 = vsel %vm1601, 0.0, %v1741
        %v1782 = vsel %vm1601, 0.0, %v1744
        %v1783 = vsel %vm1601, 0.0, %v1747
        %v1784 = vsel %vm1601, 0.0, %v1750
        %v1785 = vsel %vm1601, 0.0, %v1753
        %v1786 = vsel %vm1601, 0.0, %v1756
        %v1787 = vsel %vm1601, 0.0, %v1759
        %v1788 = vsel %vm1601, 0.0, %v1762
        %v1789 = vadd.f32 %v1711, %v1781
        %v1790 = vadd.f32 %v1712, %v1743
        %v1791 = vadd.f32 %v1711, %v1782
        %v1792 = vadd.f32 %v1712, %v1746
        %v1793 = vadd.f32 %v1713, %v1783
        %v1794 = vadd.f32 %v1714, %v1749
        %v1795 = vadd.f32 %v1715, %v1784
        %v1796 = vadd.f32 %v1716, %v1752
        %v1797 = vadd.f32 %v1717, %v1785
        %v1798 = vadd.f32 %v1718, %v1755
        %v1799 = vadd.f32 %v1719, %v1786
        %v1800 = vadd.f32 %v1720, %v1758
        %v1801 = vadd.f32 %v1721, %v1787
        %v1802 = vadd.f32 %v1722, %v1761
        %v1803 = vadd.f32 %v1723, %v1788
        %v1804 = vadd.f32 %v1724, %v1764
        %v1805 = vadd.f32 %v1789, %v1312
        %v1806 = vadd.f32 %v1790, %v1316
        %v1807 = vadd.f32 %v1791, %v1322
        %v1808 = vadd.f32 %v1792, %v1326
        %v1809 = vadd.f32 %v1793, %v1332
        %v1810 = vadd.f32 %v1794, %v1336
        %v1811 = vadd.f32 %v1795, %v1342
        %v1812 = vadd.f32 %v1796, %v1346
        %v1813 = vadd.f32 %v1797, %v1352
        %v1814 = vadd.f32 %v1798, %v1356
        %v1815 = vadd.f32 %v1799, %v1362
        %v1816 = vadd.f32 %v1800, %v1366
        %v1817 = vadd.f32 %v1801, %v1372
        %v1818 = vadd.f32 %v1802, %v1376
        %v1819 = vadd.f32 %v1803, %v1382
        %v1820 = vadd.f32 %v1804, %v1386
        %v1837 = vrot.slane %v1314, 2
        %v1838 = vrot.slane %v1318, 2
        %v1839 = vsel %vm1669, %v1837, %v1838
        %v1840 = vrot.slane %v1324, 2
        %v1841 = vrot.slane %v1328, 2
        %v1842 = vsel %vm1669, %v1840, %v1841
        %v1843 = vrot.slane %v1334, 2
        %v1844 = vrot.slane %v1338, 2
        %v1845 = vsel %vm1669, %v1843, %v1844
        %v1846 = vrot.slane %v1344, 2
        %v1847 = vrot.slane %v1348, 2
        %v1848 = vsel %vm1669, %v1846, %v1847
        %v1849 = vrot.slane %v1354, 2
        %v1850 = vrot.slane %v1358, 2
        %v1851 = vsel %vm1669, %v1849, %v1850
        %v1852 = vrot.slane %v1364, 2
        %v1853 = vrot.slane %v1368, 2
        %v1854 = vsel %vm1669, %v1852, %v1853
        %v1855 = vrot.slane %v1374, 2
        %v1856 = vrot.slane %v1378, 2
        %v1857 = vsel %vm1669, %v1855, %v1856
        %v1858 = vrot.slane %v1384, 2
        %v1859 = vrot.slane %v1388, 2
        %v1860 = vsel %vm1669, %v1858, %v1859
        %v1877 = vsel %vm1669, %v1838, 0.0
        %v1878 = vsel %vm1669, %v1841, 0.0
        %v1879 = vsel %vm1669, %v1844, 0.0
        %v1880 = vsel %vm1669, %v1847, 0.0
        %v1881 = vsel %vm1669, %v1850, 0.0
        %v1882 = vsel %vm1669, %v1853, 0.0
        %v1883 = vsel %vm1669, %v1856, 0.0
        %v1884 = vsel %vm1669, %v1859, 0.0
        %v1885 = vadd.f32 %v1805, %v1839
        %v1886 = vadd.f32 %v1806, %v1877
        %v1887 = vadd.f32 %v1807, %v1842
        %v1888 = vadd.f32 %v1808, %v1878
        %v1889 = vadd.f32 %v1809, %v1845
        %v1890 = vadd.f32 %v1810, %v1879
        %v1891 = vadd.f32 %v1811, %v1848
        %v1892 = vadd.f32 %v1812, %v1880
        %v1893 = vadd.f32 %v1813, %v1851
        %v1894 = vadd.f32 %v1814, %v1881
        %v1895 = vadd.f32 %v1815, %v1854
        %v1896 = vadd.f32 %v1816, %v1882
        %v1897 = vadd.f32 %v1817, %v1857
        %v1898 = vadd.f32 %v1818, %v1883
        %v1899 = vadd.f32 %v1819, %v1860
        %v1900 = vadd.f32 %v1820, %v1884
        %v1913 = vrot.slane %v1437, 6
        %v1914 = vrot.slane %v1441, 6
        %v1915 = vsel %vm1601, %v1913, %v1914
        %v1916 = vrot.slane %v1447, 6
        %v1917 = vrot.slane %v1451, 6
        %v1918 = vsel %vm1601, %v1916, %v1917
        %v1919 = vrot.slane %v1457, 6
        %v1920 = vrot.slane %v1461, 6
        %v1921 = vsel %vm1601, %v1919, %v1920
        %v1922 = vrot.slane %v1467, 6
        %v1923 = vrot.slane %v1471, 6
        %v1924 = vsel %vm1601, %v1922, %v1923
        %v1925 = vrot.slane %v1477, 6
        %v1926 = vrot.slane %v1481, 6
        %v1927 = vsel %vm1601, %v1925, %v1926
        %v1928 = vrot.slane %v1487, 6
        %v1929 = vrot.slane %v1491, 6
        %v1930 = vsel %vm1601, %v1928, %v1929
        %v1943 = vsel %vm1601, 0.0, %v1913
        %v1944 = vsel %vm1601, 0.0, %v1916
        %v1945 = vsel %vm1601, 0.0, %v1919
        %v1946 = vsel %vm1601, 0.0, %v1922
        %v1947 = vsel %vm1601, 0.0, %v1925
        %v1948 = vsel %vm1601, 0.0, %v1928
        %v1949 = vadd.f32 %v1885, %v1943
        %v1950 = vadd.f32 %v1886, %v1915
        %v1951 = vadd.f32 %v1887, %v1944
        %v1952 = vadd.f32 %v1888, %v1918
        %v1953 = vadd.f32 %v1889, %v1945
        %v1954 = vadd.f32 %v1890, %v1921
        %v1955 = vadd.f32 %v1891, %v1946
        %v1956 = vadd.f32 %v1892, %v1924
        %v1957 = vadd.f32 %v1893, %v1947
        %v1958 = vadd.f32 %v1894, %v1927
        %v1959 = vadd.f32 %v1895, %v1948
        %v1960 = vadd.f32 %v1896, %v1930
        %v1961 = vadd.f32 %v1897, %v1636
        %v1962 = vadd.f32 %v1898, %v1603
        %v1963 = vadd.f32 %v1899, %v1636
        %v1964 = vadd.f32 %v1900, %v1603
        %v1965 = vadd.f32 %v1949, %v1439
        %v1966 = vadd.f32 %v1950, %v1443
        %v1967 = vadd.f32 %v1951, %v1449
        %v1968 = vadd.f32 %v1952, %v1453
        %v1969 = vadd.f32 %v1953, %v1459
        %v1970 = vadd.f32 %v1954, %v1463
        %v1971 = vadd.f32 %v1955, %v1469
        %v1972 = vadd.f32 %v1956, %v1473
        %v1973 = vadd.f32 %v1957, %v1479
        %v1974 = vadd.f32 %v1958, %v1483
        %v1975 = vadd.f32 %v1959, %v1489
        %v1976 = vadd.f32 %v1960, %v1493
        %v1977 = vadd.f32 %v1961, 0.0
        %v1978 = vadd.f32 %v1962, 0.0
        %v1979 = vadd.f32 %v1963, 0.0
        %v1980 = vadd.f32 %v1964, 0.0
        %v1993 = vrot.slane %v1542, 2
        %v1994 = vrot.slane %v1545, 2
        %v1995 = vsel %vm1669, %v1993, %v1994
        %v1996 = vrot.slane %v1550, 2
        %v1997 = vrot.slane %v1553, 2
        %v1998 = vsel %vm1669, %v1996, %v1997
        %v1999 = vrot.slane %v1558, 2
        %v2000 = vrot.slane %v1561, 2
        %v2001 = vsel %vm1669, %v1999, %v2000
        %v2002 = vrot.slane %v1566, 2
        %v2003 = vrot.slane %v1569, 2
        %v2004 = vsel %vm1669, %v2002, %v2003
        %v2005 = vrot.slane %v1574, 2
        %v2006 = vrot.slane %v1577, 2
        %v2007 = vsel %vm1669, %v2005, %v2006
        %v2008 = vrot.slane %v1582, 2
        %v2009 = vrot.slane %v1585, 2
        %v2010 = vsel %vm1669, %v2008, %v2009
        %v2023 = vsel %vm1669, %v1994, 0.0
        %v2024 = vsel %vm1669, %v1997, 0.0
        %v2025 = vsel %vm1669, %v2000, 0.0
        %v2026 = vsel %vm1669, %v2003, 0.0
        %v2027 = vsel %vm1669, %v2006, 0.0
        %v2028 = vsel %vm1669, %v2009, 0.0
        %v2029 = vadd.f32 %v1965, %v1995
        %v2030 = vadd.f32 %v1966, %v2023
        %v2031 = vadd.f32 %v1967, %v1998
        %v2032 = vadd.f32 %v1968, %v2024
        %v2033 = vadd.f32 %v1969, %v2001
        %v2034 = vadd.f32 %v1970, %v2025
        %v2035 = vadd.f32 %v1971, %v2004
        %v2036 = vadd.f32 %v1972, %v2026
        %v2037 = vadd.f32 %v1973, %v2007
        %v2038 = vadd.f32 %v1974, %v2027
        %v2039 = vadd.f32 %v1975, %v2010
        %v2040 = vadd.f32 %v1976, %v2028
        %v2041 = vadd.f32 %v1977, %v1671
        %v2042 = vadd.f32 %v1978, %v1704
        %v2043 = vadd.f32 %v1979, %v1671
        %v2044 = vadd.f32 %v1980, %v1704
        %v2045 = vld [vmem:[%s4] sm:$0x1]
        %v2047 = vlaneseq
        %v2048 = vshrl.u32 %v2047, 7
        %v2049 = vsub.s32 0, %v2048
        %v2050 = vrot.slane %v2045, %v2049
        %v2052 = vadd.f32 %v2029, %v2050
        %v2053 = vadd.f32 %v2030, %v2050
        %v2054 = vadd.f32 %v2031, %v2050
        %v2055 = vadd.f32 %v2032, %v2050
        %v2056 = vadd.f32 %v2033, %v2050
        %v2057 = vadd.f32 %v2034, %v2050
        %v2058 = vadd.f32 %v2035, %v2050
        %v2059 = vadd.f32 %v2036, %v2050
        %v2060 = vadd.f32 %v2037, %v2050
        %v2061 = vadd.f32 %v2038, %v2050
        %v2062 = vadd.f32 %v2039, %v2050
        %v2063 = vadd.f32 %v2040, %v2050
        %v2064 = vadd.f32 %v2041, %v2050
        %v2065 = vadd.f32 %v2042, %v2050
        %v2066 = vadd.f32 %v2043, %v2050
        %v2067 = vadd.f32 %v2044, %v2050
        %v2068 = vpack.c.bf16 %v2053, %v2052
        %v2069 = vpack.c.bf16 %v2055, %v2054
        %v2070 = vpack.c.bf16 %v2057, %v2056
        %v2071 = vpack.c.bf16 %v2059, %v2058
        %v2072 = vpack.c.bf16 %v2061, %v2060
        %v2073 = vpack.c.bf16 %v2063, %v2062
        %v2074 = vpack.c.bf16 %v2065, %v2064
        %v2075 = vpack.c.bf16 %v2067, %v2066
        %v2076 = vld [vmem:[#allocation8] sm:$0xf]
        %v2077 = vld [vmem:[#allocation8 + $0x4] sm:$0xf]
        %v2078 = vld [vmem:[#allocation8 + $0x8] sm:$0xf]
        %v2079 = vld [vmem:[#allocation8 + $0xc] sm:$0xf]
        %v2080 = vld [vmem:[#allocation8 + $0x10] sm:$0xf]
        %v2081 = vld [vmem:[#allocation8 + $0x14] sm:$0xf]
        %v2082 = vld [vmem:[#allocation8 + $0x18] sm:$0xf]
        %v2083 = vld [vmem:[#allocation8 + $0x1c] sm:$0xf]
        %v2084 = vld [vmem:[#allocation8 + $0x20] sm:$0xf]
        %v2085 = vld [vmem:[#allocation8 + $0x24] sm:$0xf]
        %v2086 = vld [vmem:[#allocation8 + $0x28] sm:$0xf]
        %v2087 = vld [vmem:[#allocation8 + $0x2c] sm:$0xf]
        %v2088 = vld [vmem:[#allocation8 + $0x30] sm:$0xf]
        %v2089 = vld [vmem:[#allocation8 + $0x34] sm:$0xf]
        %v2090 = vld [vmem:[#allocation8 + $0x38] sm:$0xf]
        %v2091 = vld [vmem:[#allocation8 + $0x3c] sm:$0xf]
        %v2092 = vld [vmem:[%s6] sm:$0x1]
        %v2094 = vlaneseq
        %v2095 = vshrl.u32 %v2094, 7
        %v2096 = vsub.s32 0, %v2095
        %v2097 = vrot.slane %v2092, %v2096
        %v2115 = vunpack.c.l.b16 %v2076
        %v2116 = vunpack.c.l.b16 %v2077
        %v2117 = vunpack.c.l.b16 %v2078
        %v2118 = vunpack.c.l.b16 %v2079
        %v2119 = vunpack.c.l.b16 %v2080
        %v2120 = vunpack.c.l.b16 %v2081
        %v2121 = vunpack.c.l.b16 %v2082
        %v2122 = vunpack.c.l.b16 %v2083
        %v2123 = vunpack.c.l.b16 %v2084
        %v2124 = vunpack.c.l.b16 %v2085
        %v2125 = vunpack.c.l.b16 %v2086
        %v2126 = vunpack.c.l.b16 %v2087
        %v2127 = vunpack.c.l.b16 %v2088
        %v2128 = vunpack.c.l.b16 %v2089
        %v2129 = vunpack.c.l.b16 %v2090
        %v2130 = vunpack.c.l.b16 %v2091
        %v2131 = vpack.c.b16 %v2116, %v2115
        %v2132 = vpack.c.b16 %v2118, %v2117
        %v2133 = vpack.c.b16 %v2120, %v2119
        %v2134 = vpack.c.b16 %v2122, %v2121
        %v2135 = vpack.c.b16 %v2124, %v2123
        %v2136 = vpack.c.b16 %v2126, %v2125
        %v2137 = vpack.c.b16 %v2128, %v2127
        %v2138 = vpack.c.b16 %v2130, %v2129
        %2147 = vmatprep.subr.bf16.mxu0 0
        %2148 = vmatpush1.bf16.msra.mxu0 %v2138
        %2149 = vmatprep.subr.bf16.mxu0 0
        %2150 = vmatpush1.bf16.msra.mxu0 %v2137
        %2151 = vmatprep.subr.bf16.mxu0 0
        %2152 = vmatpush1.bf16.msra.mxu0 %v2136
        %2153 = vmatprep.subr.bf16.mxu0 0
        %2154 = vmatpush1.bf16.msra.mxu0 %v2135
        %2155 = vmatprep.subr.bf16.mxu0 0
        %2156 = vmatpush1.bf16.msra.mxu0 %v2134
        %2157 = vmatprep.subr.bf16.mxu0 0
        %2158 = vmatpush1.bf16.msra.mxu0 %v2133
        %2159 = vmatprep.subr.bf16.mxu0 0
        %2160 = vmatpush1.bf16.msra.mxu0 %v2132
        %2161 = vmatprep.subr.bf16.mxu0 0
        %2162 = vmatpush1.bf16.msra.mxu0 %v2131
        %2163 = vmatprep.subr.bf16.mxu0 0
        %2164 = vmatpush2.bf16.msra.mxu0 0
        %2165 = vmatprep.subr.bf16.mxu0 0
        %2166 = vmatpush2.bf16.msra.mxu0 0
        %2167 = vmatprep.subr.bf16.mxu0 0
        %2168 = vmatpush2.bf16.msra.mxu0 0
        %2169 = vmatprep.subr.bf16.mxu0 0
        %2170 = vmatpush2.bf16.msra.mxu0 0
        %2171 = vmatprep.subr.bf16.mxu0 0
        %2172 = vmatpush2.bf16.msra.mxu0 0
        %2173 = vmatprep.subr.bf16.mxu0 0
        %2174 = vmatpush2.bf16.msra.mxu0 0
        %2175 = vmatprep.subr.bf16.mxu0 0
        %2176 = vmatpush2.bf16.msra.mxu0 0
        %2177 = vmatprep.subr.bf16.mxu0 0
        %2178 = vmatpush2.bf16.msra.mxu0 0
        %2179 = vmatprep.mubr.bf16.mxu0 0
        %2180 = vmatmul.mubr.bf16.gmra.mxu0 %v2068
        %v2181 = vpop.f32.mrf.mxu0
        %v2182 = vadd.f32 %v2097, %v2181
        %v2183 = vpop.f32.mrf.mxu0
        %v2184 = vpop.f32.mrf.mxu0
        %v2185 = vadd.f32 %v2097, %v2184
        %v2186 = vpop.f32.mrf.mxu0
        %2187 = vmatprep.mubr.bf16.mxu0 0
        %2188 = vmatmul.mubr.bf16.gmra.mxu0 %v2069
        %v2189 = vpop.f32.mrf.mxu0
        %v2190 = vadd.f32 %v2097, %v2189
        %v2191 = vpop.f32.mrf.mxu0
        %v2192 = vpop.f32.mrf.mxu0
        %v2193 = vadd.f32 %v2097, %v2192
        %v2194 = vpop.f32.mrf.mxu0
        %2195 = vmatprep.mubr.bf16.mxu0 0
        %2196 = vmatmul.mubr.bf16.gmra.mxu0 %v2070
        %v2197 = vpop.f32.mrf.mxu0
        %v2198 = vadd.f32 %v2097, %v2197
        %v2199 = vpop.f32.mrf.mxu0
        %v2200 = vpop.f32.mrf.mxu0
        %v2201 = vadd.f32 %v2097, %v2200
        %v2202 = vpop.f32.mrf.mxu0
        %2203 = vmatprep.mubr.bf16.mxu0 0
        %2204 = vmatmul.mubr.bf16.gmra.mxu0 %v2071
        %v2205 = vpop.f32.mrf.mxu0
        %v2206 = vadd.f32 %v2097, %v2205
        %v2207 = vpop.f32.mrf.mxu0
        %v2208 = vpop.f32.mrf.mxu0
        %v2209 = vadd.f32 %v2097, %v2208
        %v2210 = vpop.f32.mrf.mxu0
        %2211 = vmatprep.mubr.bf16.mxu0 0
        %2212 = vmatmul.mubr.bf16.gmra.mxu0 %v2072
        %v2213 = vpop.f32.mrf.mxu0
        %v2214 = vadd.f32 %v2097, %v2213
        %v2215 = vpop.f32.mrf.mxu0
        %v2216 = vpop.f32.mrf.mxu0
        %v2217 = vadd.f32 %v2097, %v2216
        %v2218 = vpop.f32.mrf.mxu0
        %2219 = vmatprep.mubr.bf16.mxu0 0
        %2220 = vmatmul.mubr.bf16.gmra.mxu0 %v2073
        %v2221 = vpop.f32.mrf.mxu0
        %v2222 = vadd.f32 %v2097, %v2221
        %v2223 = vpop.f32.mrf.mxu0
        %v2224 = vpop.f32.mrf.mxu0
        %v2225 = vadd.f32 %v2097, %v2224
        %v2226 = vpop.f32.mrf.mxu0
        %2227 = vmatprep.mubr.bf16.mxu0 0
        %2228 = vmatmul.mubr.bf16.gmra.mxu0 %v2074
        %v2229 = vpop.f32.mrf.mxu0
        %v2230 = vadd.f32 %v2097, %v2229
        %v2231 = vpop.f32.mrf.mxu0
        %v2232 = vpop.f32.mrf.mxu0
        %v2233 = vadd.f32 %v2097, %v2232
        %v2234 = vpop.f32.mrf.mxu0
        %2235 = vmatprep.mubr.bf16.mxu0 0
        %2236 = vmatmul.mubr.bf16.gmra.mxu0 %v2075
        %v2237 = vpop.f32.mrf.mxu0
        %v2238 = vadd.f32 %v2097, %v2237
        %v2239 = vpop.f32.mrf.mxu0
        %v2240 = vpop.f32.mrf.mxu0
        %v2241 = vadd.f32 %v2097, %v2240
        %v2242 = vpop.f32.mrf.mxu0
        %2243 = vdwg.mxu0
        %v2244 = vmax.f32 %v2182, 0.0
        %v2245 = vmax.f32 %v2185, 0.0
        %v2246 = vmax.f32 %v2190, 0.0
        %v2247 = vmax.f32 %v2193, 0.0
        %v2248 = vmax.f32 %v2198, 0.0
        %v2249 = vmax.f32 %v2201, 0.0
        %v2250 = vmax.f32 %v2206, 0.0
        %v2251 = vmax.f32 %v2209, 0.0
        %v2252 = vmax.f32 %v2214, 0.0
        %v2253 = vmax.f32 %v2217, 0.0
        %v2254 = vmax.f32 %v2222, 0.0
        %v2255 = vmax.f32 %v2225, 0.0
        %v2256 = vmax.f32 %v2230, 0.0
        %v2257 = vmax.f32 %v2233, 0.0
        %v2258 = vmax.f32 %v2238, 0.0
        %v2259 = vmax.f32 %v2241, 0.0
        %v2260 = vadd.f32 %v2244, %v342
        %v2261 = vadd.f32 %v2245, %v343
        %v2262 = vadd.f32 %v2246, %v344
        %v2263 = vadd.f32 %v2247, %v345
        %v2264 = vadd.f32 %v2248, %v346
        %v2265 = vadd.f32 %v2249, %v347
        %v2266 = vadd.f32 %v2250, %v348
        %v2267 = vadd.f32 %v2251, %v349
        %v2268 = vadd.f32 %v2252, %v350
        %v2269 = vadd.f32 %v2253, %v351
        %v2270 = vadd.f32 %v2254, %v352
        %v2271 = vadd.f32 %v2255, %v353
        %v2272 = vadd.f32 %v2256, %v354
        %v2273 = vadd.f32 %v2257, %v355
        %v2274 = vadd.f32 %v2258, %v356
        %v2275 = vadd.f32 %v2259, %v357
        %2276 = vst [vmem:[%s340] sm:$0xff] %v2260
        %2277 = vst [vmem:[%s340 + $0x8] sm:$0xff] %v2261
        %2278 = vst [vmem:[%s340 + $0x10] sm:$0xff] %v2262
        %2279 = vst [vmem:[%s340 + $0x18] sm:$0xff] %v2263
        %2280 = vst [vmem:[%s340 + $0x20] sm:$0xff] %v2264
        %2281 = vst [vmem:[%s340 + $0x28] sm:$0xff] %v2265
        %2282 = vst [vmem:[%s340 + $0x30] sm:$0xff] %v2266
        %2283 = vst [vmem:[%s340 + $0x38] sm:$0xff] %v2267
        %2284 = vst [vmem:[%s340 + $0x40] sm:$0xff] %v2268
        %2285 = vst [vmem:[%s340 + $0x48] sm:$0xff] %v2269
        %2286 = vst [vmem:[%s340 + $0x50] sm:$0xff] %v2270
        %2287 = vst [vmem:[%s340 + $0x58] sm:$0xff] %v2271
        %2288 = vst [vmem:[%s340 + $0x60] sm:$0xff] %v2272
        %2289 = vst [vmem:[%s340 + $0x68] sm:$0xff] %v2273
        %2290 = vst [vmem:[%s340 + $0x70] sm:$0xff] %v2274
        %2291 = vst [vmem:[%s340 + $0x78] sm:$0xff] %v2275
        %s2292 = sand.u32 %s186, 1
        %s2293 = scalar_lea.sflag [#allocation4], %s2292
        %s2294 = sand.u32 %s186, 1
        %s2295 = smul.addr %s2294, 128
        %s2296 = scalar_lea.vmem [#allocation10], %s2295
        // Predicated region
        $region65: #{tpu_custom_call.1} parent=47 // pred_check
          %p2297 = pneg %p196
        $region66: #{tpu_custom_call.1} parent=47 // pred_check_branch
          %2299 = sbr.rel (%p2297) target = $region68
        $region67: #{tpu_custom_call.1} parent=47 // pred_region
          %s2301 = ssub.s32 2048, 2048
          %2302 = vsyncadd %s2293, %s2301
          %s2303 = smul.addr %s26, 16
          %s2304 = smul.addr %s2303, 128
          %s2305 = scalar_lea.hbm %s7, %s2304
          %s2306 = sshll.u32 %s2296, 4
          %s2307 = int_to_ptr.vmem [resolvable:$true] %s2306
          %2312 = dma.vmem_to_hbm [thread:$0]  %s2307, 2048, %s2305, %s2293, 128, 128, 8
        $region68: #{tpu_custom_call.1} parent=47 // pred_fallthru
          _
      $region48: #{tpu_custom_call.1} parent=5 // pred_fallthru
        _
      %p2313 = scmp.le.s32.totalorder 2, %s21
      // Predicated region
      $region69: #{tpu_custom_call.1} parent=5 // pred_check
        %p2314 = pneg %p2313
      $region70: #{tpu_custom_call.1} parent=5 // pred_check_branch
        %2316 = sbr.rel (%p2314) target = $region72
      $region71: #{tpu_custom_call.1} parent=5 // pred_region
        %s2317 = ssub.s32 %s21, 2
        // Predicated region
        $region73: #{tpu_custom_call.1} parent=71 // pred_check
          %p2318 = pneg %p202
        $region74: #{tpu_custom_call.1} parent=71 // pred_check_branch
          %2320 = sbr.rel (%p2318) target = $region76
        $region75: #{tpu_custom_call.1} parent=71 // pred_region
          %s2321 = sand.u32 %s187, 1
          %s2322 = scalar_lea.sflag [#allocation4], %s2321
          %s2323 = sand.u32 %s187, 1
          %s2324 = smul.addr %s2323, 128
          %s2325 = scalar_lea.vmem [#allocation10], %s2324
          %2326 = dma.done %s2322, 2048
        $region76: #{tpu_custom_call.1} parent=71 // pred_fallthru
          _
      $region72: #{tpu_custom_call.1} parent=5 // pred_fallthru
        _
    $region6: #{tpu_custom_call.1} parent=1 // loop_footer
      %s25 = sadd.s32 1, %s21
    $region7: #{tpu_custom_call.1} parent=1 // loop_footer_branch
      %20 = sbr.rel target = $region3
    $region8: #{tpu_custom_call.1} parent=1 // loop_exit
      _
    %2327 = vsyncpa [#allocation3], 1
    %s2328 = scalar_lea.sflag [#allocation3], 1
    %2329 = vsyncpa %s2328, 1
    %2330 = vsyncpa [#allocation6], 1
    %2331 = vsyncpa [#allocation9], 1
    %2332 = vsyncpa [#allocation4], 1
    %s2333 = scalar_lea.sflag [#allocation4], 1
    %2334 = vsyncpa %s2333, 1

</llo_original>
